<compile_context>
chip_gen: v5e
topology: v5e:2x2
jax: 0.10.0
libtpu: 0.0.40
codegen_flags: <defaults>
</compile_context>

<pallas_src>
import functools

import jax
import jax.numpy as jnp
from jax.experimental import pallas as pl
from jax.experimental.pallas import tpu as pltpu

# ----------------------------- configuration -------------------------------
NUM_PTS = 6                      # MLP_for(6)
C_STEM, C_EXP, C_PROJ, C_LAST = 16, 48, 32, 64    # reduced MobileNetV2 widths
CF = C_LAST                      # avgpool feature width
M1, M2, M3, M4, M5 = 32, 32, 32, 64, 128           # MLP_for point-conv widths
M6, M7, M8 = 64, 32, 16
ATTR_DIM = 3 * NUM_PTS           # _3D_attr size (18)
PAD_L = 8                        # left halo width (sublane aligned)
PAD_R = 8                        # right halo width (keeps halo stores aligned)
K_STEM = 9 * 3                   # stem im2col columns
K_PAD = 32                       # zero-padded stem K (packs better than 27)


# --------------------------- fused Pallas kernel ----------------------------
def _synergy_kernel(
    # inputs
    p_ref,
    w_stem, b_stem, w_exp, b_exp, w_dw, b_dw, w_pl, b_pl,
    w_fc, b_fc, gmask,
    w_g1, b1, w2, b2, w3, b3, w4, b4, w5, b5,
    w6a, w6b, w6c, b6, w7, b7, w8, b8, w9, b9,
    # output
    out_ref,
    # scratch
    pad_scr,
    *, bt, ho, wo):
  s = ho * wo
  f32, bf16 = jnp.float32, jnp.bfloat16
  relu6 = lambda v: jnp.clip(v, 0.0, 6.0)
  relu = lambda v: jnp.maximum(v, 0.0)
  wpad = PAD_L + wo + PAD_R

  def mm(x, w_ref, b_ref=None):
    y = jnp.dot(x.astype(bf16), w_ref[...], preferred_element_type=f32)
    return y if b_ref is None else y + b_ref[...]

  # ----------------- I2P backbone (fully VMEM resident) ------------------
  # stem 3x3/s2 conv (patch matmul) then expand 1x1 conv, BN folded.
  h = relu6(mm(p_ref[...], w_stem, b_stem))           # (bt*s, C_STEM)
  h = relu6(mm(h, w_exp, b_exp))                      # (bt*s, C_EXP)

  # depthwise 3x3/s1 conv via a zero-halo scratch.  Only the halo is zeroed
  # (aligned 8-wide column blocks + top/bottom rows); the interior is written
  # by ONE block store (layout-preserving reshape, leading dims only).
  zrow = jnp.zeros((bt, 1, wpad, C_EXP), f32)
  pad_scr[:, 0:1, :, :] = zrow
  pad_scr[:, ho + 1:ho + 2, :, :] = zrow
  zcol = jnp.zeros((bt, ho, PAD_L, C_EXP), f32)
  pad_scr[:, 1:1 + ho, 0:PAD_L, :] = zcol
  pad_scr[:, 1:1 + ho, PAD_L + wo:PAD_L + wo + PAD_R, :] = zcol
  pad_scr[:, 1:1 + ho, PAD_L:PAD_L + wo, :] = h.reshape(bt, ho, wo, C_EXP)

  # Factor the dx (W) shift: three W-shifted slabs over all ho+2 rows
  # (2 sublane-misaligned extractions instead of 6); dy is a cheap
  # leading-dim row slice.
  slabs = (pad_scr[:, :, PAD_L - 1:PAD_L - 1 + wo, :],
           pad_scr[:, :, PAD_L:PAD_L + wo, :],
           pad_scr[:, :, PAD_L + 1:PAD_L + 1 + wo, :])
  wdw = w_dw[...]                                     # (9, 1, C_EXP)
  acc = None
  for dy in range(3):
    for dx in range(3):
      term = slabs[dx][:, dy:dy + ho, :, :] * wdw[dy * 3 + dx]
      acc = term if acc is None else acc + term
  dw = relu6(acc + b_dw[...])                         # (bt, ho, wo, C_EXP)

  # proj(1x1, linear) and last(1x1, relu6) folded offline into one matmul.
  feats = relu6(mm(dw.reshape(bt * s, C_EXP), w_pl, b_pl))   # (bt*s, CF)

  # ------------- head (avgpool + FC) and MLP_for, batched over bt ----------
  pool = jnp.mean(feats.reshape(bt, s, CF), axis=1)          # (bt, CF)
  pool_b = pool.astype(bf16)                                 # reused twice

  # _3D_attr = pool @ fc_w + b_fc ; pts[b*N+n, c] = attr[b, c*N+n] is realised
  # as (broadcast(attr) * mask) @ (gather @ w1), with gather@w1 folded offline.
  attr = mm(pool_b, w_fc, b_fc)                              # (bt, ATTR_DIM)
  battr = (attr.reshape(bt, 1, ATTR_DIM) * gmask[...]).reshape(
      bt * NUM_PTS, ATTR_DIM)

  # PointNet-style MLP_for (1x1 conv1d == row matmuls), all points batched.
  h1 = relu(mm(battr, w_g1, b1))                             # (bt*N, M1)
  h2 = relu(mm(h1, w2, b2))                                  # point features
  h2b = h2.astype(bf16)                                      # reused twice
  h3 = relu(mm(h2b, w3, b3))
  h4 = relu(mm(h3, w4, b4))
  h5 = relu(mm(h4, w5, b5))
  g = jnp.max(h5.reshape(bt, NUM_PTS, M5), axis=1)           # (bt, M5) global
  h6 = relu((mm(h2b, w6a).reshape(bt, NUM_PTS, M6)
             + mm(g, w6b).reshape(bt, 1, M6)
             + mm(pool_b, w6c).reshape(bt, 1, M6)
             + b6[...]).reshape(bt * NUM_PTS, M6))
  h7 = relu(mm(h6, w7, b7))
  h8 = relu(mm(h7, w8, b8))
  res = mm(h8, w9, b9)                                       # (bt*N, 3)
  out_ref[...] = res.reshape(bt, NUM_PTS, 3)


# ------------------------------- JAX glue -----------------------------------
def im2col(x, k, stride, pad):
  """x: (B, H, W, C) -> patches (B, Ho, Wo, k*k, C).  Stem-only XLA prologue."""
  x = jnp.pad(x, ((0, 0), (pad, pad), (pad, pad), (0, 0)))
  _, hp, wp, _ = x.shape
  ho = (hp - k) // stride + 1
  wo = (wp - k) // stride + 1
  taps = []
  for dy in range(k):
    for dx in range(k):
      taps.append(x[:, dy:dy + stride * ho:stride,
                    dx:dx + stride * wo:stride, :])
  return jnp.stack(taps, axis=3), ho, wo


def synergynet_forward(x, kp, *, batch_tile=1):
  """x: (B, 3, H, W) float32 (PyTorch NCHW) -> (B, NUM_PTS, 3)."""
  B = x.shape[0]
  assert B % batch_tile == 0
  bt = batch_tile
  xh = jnp.transpose(x, (0, 2, 3, 1))                        # NCHW -> NHWC
  p, ho, wo = im2col(xh, 3, 2, 1)                            # stem 3x3 stride-2
  s = ho * wo
  p = p.reshape(B * s, K_STEM)
  p = jnp.pad(p, ((0, 0), (0, K_PAD - K_STEM))).astype(jnp.bfloat16)

  names = ("stem_w", "stem_b", "exp_w", "exp_b", "dw_w", "dw_b",
           "pl_w", "pl_b", "fc_w", "fc_b", "gmask",
           "g1_w", "m1_b", "m2_w", "m2_b", "m3_w", "m3_b", "m4_w", "m4_b",
           "m5_w", "m5_b", "m6a_w", "m6b_w", "m6c_w", "m6_b",
           "m7_w", "m7_b", "m8_w", "m8_b", "m9_w", "m9_b")
  wargs = [kp[n] for n in names]

  def const_spec(a):
    nd = a.ndim
    return pl.BlockSpec(a.shape, lambda g, _n=nd: (0,) * _n)

  kernel = functools.partial(_synergy_kernel, bt=bt, ho=ho, wo=wo)
  return pl.pallas_call(
      kernel,
      grid=(B // bt,),
      out_shape=jax.ShapeDtypeStruct((B, NUM_PTS, 3), jnp.float32),
      in_specs=[pl.BlockSpec((bt * s, K_PAD), lambda g: (g, 0))]
               + [const_spec(a) for a in wargs],
      out_specs=pl.BlockSpec((bt, NUM_PTS, 3), lambda g: (g, 0, 0)),
      scratch_shapes=[
          pltpu.VMEM((bt, ho + 2, PAD_L + wo + PAD_R, C_EXP), jnp.float32)],
      compiler_params=pltpu.CompilerParams(
          dimension_semantics=("parallel",)),
  )(p, *wargs)


# --------------------------- deterministic params ---------------------------
def init_params(key):
  shapes = {
      "stem_w": (K_STEM, C_STEM), "exp_w": (C_STEM, C_EXP),
      "dw_w": (9, C_EXP), "proj_w": (C_EXP, C_PROJ),
      "last_w": (C_PROJ, C_LAST), "fc_w": (C_LAST, ATTR_DIM),
      "m1_w": (3, M1), "m2_w": (M1, M2), "m3_w": (M2, M3),
      "m4_w": (M3, M4), "m5_w": (M4, M5),
      "m6_w": (M2 + M5 + CF, M6), "m7_w": (M6, M7),
      "m8_w": (M7, M8), "m9_w": (M8, 3),
  }
  params = {}
  keys = jax.random.split(key, len(shapes))
  for k, (name, shp) in zip(keys, sorted(shapes.items())):
    fan_in = shp[0]
    params[name] = (jax.random.normal(k, shp, jnp.float32)
                    / jnp.sqrt(jnp.float32(fan_in)))
    params[name.replace("_w", "_b")] = jnp.zeros((shp[-1],), jnp.float32)
  return params


def prepare_params(params):
  """Offline folding / repacking of PyTorch-style params for the fused kernel."""
  bf16, f32 = jnp.bfloat16, jnp.float32
  row = lambda v: v.reshape(1, -1).astype(f32)

  # Fold the linear proj 1x1 conv into the following relu6 "last" 1x1 conv:
  # relu6((x@Wp + bp)@Wl + bl) == relu6(x@(Wp@Wl) + (bp@Wl + bl)) -- exact.
  w_pl = (params["proj_w"] @ params["last_w"]).astype(bf16)
  b_pl = (params["proj_b"] @ params["last_w"]
          + params["last_b"]).reshape(1, -1).astype(f32)

  # Stem weights zero-padded to the K_PAD im2col columns (exact).
  stem_w = jnp.pad(params["stem_w"],
                   ((0, K_PAD - K_STEM), (0, 0))).astype(bf16)

  # Landmark gather: pts[n, c] = attr[c*NUM_PTS + n].  gmask selects the
  # columns of each point; the column->coordinate gather matrix is folded into
  # the first MLP weight (both linear, exact), so the kernel does one FC
  # matmul plus one masked gather matmul and no lane-splitting reshape.
  j = jnp.arange(ATTR_DIM)
  gmask = (j[None, :] % NUM_PTS == jnp.arange(NUM_PTS)[:, None]).astype(f32)
  gsel = (j[:, None] // NUM_PTS == jnp.arange(3)[None, :]).astype(f32)
  g1_w = (gsel @ params["m1_w"]).astype(bf16)               # (ATTR_DIM, M1)

  w6 = params["m6_w"]
  kp = {
      "stem_w": stem_w, "stem_b": row(params["stem_b"]),
      "exp_w": params["exp_w"].astype(bf16), "exp_b": row(params["exp_b"]),
      "dw_w": params["dw_w"].reshape(9, 1, C_EXP).astype(f32),
      "dw_b": row(params["dw_b"]),
      "pl_w": w_pl, "pl_b": b_pl,
      "fc_w": params["fc_w"].astype(bf16), "fc_b": row(params["fc_b"]),
      "gmask": gmask,
      "g1_w": g1_w, "m1_b": row(params["m1_b"]),
      "m6a_w": w6[:M2].astype(bf16),
      "m6b_w": w6[M2:M2 + M5].astype(bf16),
      "m6c_w": w6[M2 + M5:].astype(bf16),
      "m6_b": row(params["m6_b"]),
  }
  for i in (2, 3, 4, 5, 7, 8, 9):
    kp[f"m{i}_w"] = params[f"m{i}_w"].astype(bf16)
    kp[f"m{i}_b"] = row(params[f"m{i}_b"])
  return kp


# --------------------------------- main --------------------------------------
if __name__ == "__main__":
  key = jax.random.PRNGKey(0)
  kx, kparam = jax.random.split(key)
  x = jax.random.normal(kx, (2, 3, 16, 16), jnp.float32)     # NCHW like PyTorch
  params = init_params(kparam)
  kparams = prepare_params(params)

  fwd = jax.jit(lambda inp: synergynet_forward(inp, kparams))
  out = jax.block_until_ready(fwd(x))
  assert out.shape == (2, NUM_PTS, 3), out.shape
  assert out.dtype == jnp.float32
  assert bool(jnp.isfinite(out).all())
  print("KERNEL_OK")
</pallas_src>

<mosaic_0001>
module attributes {stable_mosaic.version = 11 : i64} {
  func.func @_synergy_kernel(%arg0: i32, %arg1: memref<64x32xbf16, #tpu.memory_space<vmem>>, %arg2: memref<32x16xbf16, #tpu.memory_space<vmem>>, %arg3: memref<1x16xf32, #tpu.memory_space<vmem>>, %arg4: memref<16x48xbf16, #tpu.memory_space<vmem>>, %arg5: memref<1x48xf32, #tpu.memory_space<vmem>>, %arg6: memref<9x1x48xf32, #tpu.memory_space<vmem>>, %arg7: memref<1x48xf32, #tpu.memory_space<vmem>>, %arg8: memref<48x64xbf16, #tpu.memory_space<vmem>>, %arg9: memref<1x64xf32, #tpu.memory_space<vmem>>, %arg10: memref<64x18xbf16, #tpu.memory_space<vmem>>, %arg11: memref<1x18xf32, #tpu.memory_space<vmem>>, %arg12: memref<6x18xf32, #tpu.memory_space<vmem>>, %arg13: memref<18x32xbf16, #tpu.memory_space<vmem>>, %arg14: memref<1x32xf32, #tpu.memory_space<vmem>>, %arg15: memref<32x32xbf16, #tpu.memory_space<vmem>>, %arg16: memref<1x32xf32, #tpu.memory_space<vmem>>, %arg17: memref<32x32xbf16, #tpu.memory_space<vmem>>, %arg18: memref<1x32xf32, #tpu.memory_space<vmem>>, %arg19: memref<32x64xbf16, #tpu.memory_space<vmem>>, %arg20: memref<1x64xf32, #tpu.memory_space<vmem>>, %arg21: memref<64x128xbf16, #tpu.memory_space<vmem>>, %arg22: memref<1x128xf32, #tpu.memory_space<vmem>>, %arg23: memref<32x64xbf16, #tpu.memory_space<vmem>>, %arg24: memref<128x64xbf16, #tpu.memory_space<vmem>>, %arg25: memref<64x64xbf16, #tpu.memory_space<vmem>>, %arg26: memref<1x64xf32, #tpu.memory_space<vmem>>, %arg27: memref<64x32xbf16, #tpu.memory_space<vmem>>, %arg28: memref<1x32xf32, #tpu.memory_space<vmem>>, %arg29: memref<32x16xbf16, #tpu.memory_space<vmem>>, %arg30: memref<1x16xf32, #tpu.memory_space<vmem>>, %arg31: memref<16x3xbf16, #tpu.memory_space<vmem>>, %arg32: memref<1x3xf32, #tpu.memory_space<vmem>>, %arg33: memref<1x6x3xf32, #tpu.memory_space<vmem>>, %arg34: memref<1x10x24x48xf32, #tpu.memory_space<vmem>>) attributes {dimension_semantics = [#tpu.dimension_semantics<parallel>], iteration_bounds = array<i64: 2>, scalar_prefetch = 0 : i64, scratch_operands = 1 : i64, tpu.core_type = #tpu.core_type<tc>, window_params = [{transform_indices = @transform_0, window_bounds = array<i64: 64, 32>}, {pipeline_mode = #tpu.pipeline_mode<synchronous>, transform_indices = @transform_1, window_bounds = array<i64: 32, 16>}, {pipeline_mode = #tpu.pipeline_mode<synchronous>, transform_indices = @transform_2, window_bounds = array<i64: 1, 16>}, {pipeline_mode = #tpu.pipeline_mode<synchronous>, transform_indices = @transform_3, window_bounds = array<i64: 16, 48>}, {pipeline_mode = #tpu.pipeline_mode<synchronous>, transform_indices = @transform_4, window_bounds = array<i64: 1, 48>}, {pipeline_mode = #tpu.pipeline_mode<synchronous>, transform_indices = @transform_5, window_bounds = array<i64: 9, 1, 48>}, {pipeline_mode = #tpu.pipeline_mode<synchronous>, transform_indices = @transform_6, window_bounds = array<i64: 1, 48>}, {pipeline_mode = #tpu.pipeline_mode<synchronous>, transform_indices = @transform_7, window_bounds = array<i64: 48, 64>}, {pipeline_mode = #tpu.pipeline_mode<synchronous>, transform_indices = @transform_8, window_bounds = array<i64: 1, 64>}, {pipeline_mode = #tpu.pipeline_mode<synchronous>, transform_indices = @transform_9, window_bounds = array<i64: 64, 18>}, {pipeline_mode = #tpu.pipeline_mode<synchronous>, transform_indices = @transform_10, window_bounds = array<i64: 1, 18>}, {pipeline_mode = #tpu.pipeline_mode<synchronous>, transform_indices = @transform_11, window_bounds = array<i64: 6, 18>}, {pipeline_mode = #tpu.pipeline_mode<synchronous>, transform_indices = @transform_12, window_bounds = array<i64: 18, 32>}, {pipeline_mode = #tpu.pipeline_mode<synchronous>, transform_indices = @transform_13, window_bounds = array<i64: 1, 32>}, {pipeline_mode = #tpu.pipeline_mode<synchronous>, transform_indices = @transform_14, window_bounds = array<i64: 32, 32>}, {pipeline_mode = #tpu.pipeline_mode<synchronous>, transform_indices = @transform_15, window_bounds = array<i64: 1, 32>}, {pipeline_mode = #tpu.pipeline_mode<synchronous>, transform_indices = @transform_16, window_bounds = array<i64: 32, 32>}, {pipeline_mode = #tpu.pipeline_mode<synchronous>, transform_indices = @transform_17, window_bounds = array<i64: 1, 32>}, {pipeline_mode = #tpu.pipeline_mode<synchronous>, transform_indices = @transform_18, window_bounds = array<i64: 32, 64>}, {pipeline_mode = #tpu.pipeline_mode<synchronous>, transform_indices = @transform_19, window_bounds = array<i64: 1, 64>}, {pipeline_mode = #tpu.pipeline_mode<synchronous>, transform_indices = @transform_20, window_bounds = array<i64: 64, 128>}, {pipeline_mode = #tpu.pipeline_mode<synchronous>, transform_indices = @transform_21, window_bounds = array<i64: 1, 128>}, {pipeline_mode = #tpu.pipeline_mode<synchronous>, transform_indices = @transform_22, window_bounds = array<i64: 32, 64>}, {pipeline_mode = #tpu.pipeline_mode<synchronous>, transform_indices = @transform_23, window_bounds = array<i64: 128, 64>}, {pipeline_mode = #tpu.pipeline_mode<synchronous>, transform_indices = @transform_24, window_bounds = array<i64: 64, 64>}, {pipeline_mode = #tpu.pipeline_mode<synchronous>, transform_indices = @transform_25, window_bounds = array<i64: 1, 64>}, {pipeline_mode = #tpu.pipeline_mode<synchronous>, transform_indices = @transform_26, window_bounds = array<i64: 64, 32>}, {pipeline_mode = #tpu.pipeline_mode<synchronous>, transform_indices = @transform_27, window_bounds = array<i64: 1, 32>}, {pipeline_mode = #tpu.pipeline_mode<synchronous>, transform_indices = @transform_28, window_bounds = array<i64: 32, 16>}, {pipeline_mode = #tpu.pipeline_mode<synchronous>, transform_indices = @transform_29, window_bounds = array<i64: 1, 16>}, {pipeline_mode = #tpu.pipeline_mode<synchronous>, transform_indices = @transform_30, window_bounds = array<i64: 16, 3>}, {pipeline_mode = #tpu.pipeline_mode<synchronous>, transform_indices = @transform_31, window_bounds = array<i64: 1, 3>}, {transform_indices = @transform_32, window_bounds = array<i64: 1, 6, 3>}]} {
    %c0 = arith.constant 0 : index
    %c0_0 = arith.constant 0 : index
    %0 = vector.load %arg1[%c0, %c0_0] : memref<64x32xbf16, #tpu.memory_space<vmem>>, vector<64x32xbf16>
    %c0_1 = arith.constant 0 : index
    %c0_2 = arith.constant 0 : index
    %1 = vector.load %arg2[%c0_1, %c0_2] : memref<32x16xbf16, #tpu.memory_space<vmem>>, vector<32x16xbf16>
    %cst = arith.constant dense<0.000000e+00> : vector<64x16xf32>
    %2 = tpu.matmul %0, %1, %cst {dimension_numbers = #tpu.dot_dimension_numbers<[1], [0], [0], [1], [0, 0, 1, 1], [], []>} : vector<64x32xbf16>, vector<32x16xbf16>, vector<64x16xf32> -> vector<64x16xf32>
    %c0_3 = arith.constant 0 : index
    %c0_4 = arith.constant 0 : index
    %3 = vector.load %arg3[%c0_3, %c0_4] : memref<1x16xf32, #tpu.memory_space<vmem>>, vector<1x16xf32>
    %4 = vector.broadcast %3 : vector<1x16xf32> to vector<64x16xf32>
    %5 = arith.addf %2, %4 : vector<64x16xf32>
    %cst_5 = arith.constant 0.000000e+00 : f32
    %cst_6 = arith.constant 6.000000e+00 : f32
    %6 = vector.broadcast %cst_5 : f32 to vector<64x16xf32>
    %7 = arith.maximumf %6, %5 : vector<64x16xf32>
    %8 = vector.broadcast %cst_6 : f32 to vector<64x16xf32>
    %9 = arith.minimumf %8, %7 : vector<64x16xf32>
    %10 = arith.truncf %9 : vector<64x16xf32> to vector<64x16xbf16>
    %c0_7 = arith.constant 0 : index
    %c0_8 = arith.constant 0 : index
    %11 = vector.load %arg4[%c0_7, %c0_8] : memref<16x48xbf16, #tpu.memory_space<vmem>>, vector<16x48xbf16>
    %cst_9 = arith.constant dense<0.000000e+00> : vector<64x48xf32>
    %12 = tpu.matmul %10, %11, %cst_9 {dimension_numbers = #tpu.dot_dimension_numbers<[1], [0], [0], [1], [0, 0, 1, 1], [], []>} : vector<64x16xbf16>, vector<16x48xbf16>, vector<64x48xf32> -> vector<64x48xf32>
    %c0_10 = arith.constant 0 : index
    %c0_11 = arith.constant 0 : index
    %13 = vector.load %arg5[%c0_10, %c0_11] : memref<1x48xf32, #tpu.memory_space<vmem>>, vector<1x48xf32>
    %14 = vector.broadcast %13 : vector<1x48xf32> to vector<64x48xf32>
    %15 = arith.addf %12, %14 : vector<64x48xf32>
    %cst_12 = arith.constant 0.000000e+00 : f32
    %cst_13 = arith.constant 6.000000e+00 : f32
    %16 = vector.broadcast %cst_12 : f32 to vector<64x48xf32>
    %17 = arith.maximumf %16, %15 : vector<64x48xf32>
    %18 = vector.broadcast %cst_13 : f32 to vector<64x48xf32>
    %19 = arith.minimumf %18, %17 : vector<64x48xf32>
    %cst_14 = arith.constant 0.000000e+00 : f32
    %20 = vector.broadcast %cst_14 : f32 to vector<1x1x24x48xf32>
    %c0_15 = arith.constant 0 : index
    %c0_16 = arith.constant 0 : index
    %c0_17 = arith.constant 0 : index
    %c0_18 = arith.constant 0 : index
    %21 = vector.load %arg34[%c0_15, %c0_16, %c0_17, %c0_18] : memref<1x10x24x48xf32, #tpu.memory_space<vmem>>, vector<1x1x24x48xf32>
    tpu.vector_store %arg34[%c0_15, %c0_16, %c0_17, %c0_18], %20 {strides = array<i32>} : memref<1x10x24x48xf32, #tpu.memory_space<vmem>>, vector<1x1x24x48xf32>,
    %c0_19 = arith.constant 0 : index
    %c9 = arith.constant 9 : index
    %c0_20 = arith.constant 0 : index
    %c0_21 = arith.constant 0 : index
    %22 = vector.load %arg34[%c0_19, %c9, %c0_20, %c0_21] : memref<1x10x24x48xf32, #tpu.memory_space<vmem>>, vector<1x1x24x48xf32>
    tpu.vector_store %arg34[%c0_19, %c9, %c0_20, %c0_21], %20 {strides = array<i32>} : memref<1x10x24x48xf32, #tpu.memory_space<vmem>>, vector<1x1x24x48xf32>,
    %cst_22 = arith.constant 0.000000e+00 : f32
    %23 = vector.broadcast %cst_22 : f32 to vector<1x8x8x48xf32>
    %c0_23 = arith.constant 0 : index
    %c1 = arith.constant 1 : index
    %c0_24 = arith.constant 0 : index
    %c0_25 = arith.constant 0 : index
    %24 = vector.load %arg34[%c0_23, %c1, %c0_24, %c0_25] : memref<1x10x24x48xf32, #tpu.memory_space<vmem>>, vector<1x8x8x48xf32>
    tpu.vector_store %arg34[%c0_23, %c1, %c0_24, %c0_25], %23 {strides = array<i32>} : memref<1x10x24x48xf32, #tpu.memory_space<vmem>>, vector<1x8x8x48xf32>,
    %c0_26 = arith.constant 0 : index
    %c1_27 = arith.constant 1 : index
    %c16 = arith.constant 16 : index
    %c0_28 = arith.constant 0 : index
    %25 = vector.load %arg34[%c0_26, %c1_27, %c16, %c0_28] : memref<1x10x24x48xf32, #tpu.memory_space<vmem>>, vector<1x8x8x48xf32>
    tpu.vector_store %arg34[%c0_26, %c1_27, %c16, %c0_28], %23 {strides = array<i32>} : memref<1x10x24x48xf32, #tpu.memory_space<vmem>>, vector<1x8x8x48xf32>,
    %26 = vector.shape_cast %19 : vector<64x48xf32> to vector<1x8x8x48xf32>
    %c0_29 = arith.constant 0 : index
    %c1_30 = arith.constant 1 : index
    %c8 = arith.constant 8 : index
    %c0_31 = arith.constant 0 : index
    %27 = vector.load %arg34[%c0_29, %c1_30, %c8, %c0_31] : memref<1x10x24x48xf32, #tpu.memory_space<vmem>>, vector<1x8x8x48xf32>
    tpu.vector_store %arg34[%c0_29, %c1_30, %c8, %c0_31], %26 {strides = array<i32>} : memref<1x10x24x48xf32, #tpu.memory_space<vmem>>, vector<1x8x8x48xf32>,
    %c0_32 = arith.constant 0 : index
    %c0_33 = arith.constant 0 : index
    %c7 = arith.constant 7 : index
    %c0_34 = arith.constant 0 : index
    %28 = vector.load %arg34[%c0_32, %c0_33, %c7, %c0_34] : memref<1x10x24x48xf32, #tpu.memory_space<vmem>>, vector<1x10x8x48xf32>
    %c0_35 = arith.constant 0 : index
    %c0_36 = arith.constant 0 : index
    %c8_37 = arith.constant 8 : index
    %c0_38 = arith.constant 0 : index
    %29 = vector.load %arg34[%c0_35, %c0_36, %c8_37, %c0_38] : memref<1x10x24x48xf32, #tpu.memory_space<vmem>>, vector<1x10x8x48xf32>
    %c0_39 = arith.constant 0 : index
    %c0_40 = arith.constant 0 : index
    %c9_41 = arith.constant 9 : index
    %c0_42 = arith.constant 0 : index
    %30 = vector.load %arg34[%c0_39, %c0_40, %c9_41, %c0_42] : memref<1x10x24x48xf32, #tpu.memory_space<vmem>>, vector<1x10x8x48xf32>
    %c0_43 = arith.constant 0 : index
    %c0_44 = arith.constant 0 : index
    %c0_45 = arith.constant 0 : index
    %31 = vector.load %arg6[%c0_43, %c0_44, %c0_45] : memref<9x1x48xf32, #tpu.memory_space<vmem>>, vector<9x1x48xf32>
    %32 = vector.extract_strided_slice %28 {offsets = [0, 0, 0, 0], sizes = [1, 8, 8, 48], strides = [1, 1, 1, 1]} : vector<1x10x8x48xf32> to vector<1x8x8x48xf32>
    %33 = vector.extract_strided_slice %31 {offsets = [0, 0, 0], sizes = [1, 1, 48], strides = [1, 1, 1]} : vector<9x1x48xf32> to vector<1x1x48xf32>
    %34 = vector.shape_cast %33 : vector<1x1x48xf32> to vector<1x48xf32>
    %35 = vector.shape_cast %34 : vector<1x48xf32> to vector<1x1x1x48xf32>
    %36 = vector.broadcast %35 : vector<1x1x1x48xf32> to vector<1x8x8x48xf32>
    %37 = arith.mulf %32, %36 : vector<1x8x8x48xf32>
    %38 = vector.extract_strided_slice %29 {offsets = [0, 0, 0, 0], sizes = [1, 8, 8, 48], strides = [1, 1, 1, 1]} : vector<1x10x8x48xf32> to vector<1x8x8x48xf32>
    %39 = vector.extract_strided_slice %31 {offsets = [1, 0, 0], sizes = [1, 1, 48], strides = [1, 1, 1]} : vector<9x1x48xf32> to vector<1x1x48xf32>
    %40 = vector.shape_cast %39 : vector<1x1x48xf32> to vector<1x48xf32>
    %41 = vector.shape_cast %40 : vector<1x48xf32> to vector<1x1x1x48xf32>
    %42 = vector.broadcast %41 : vector<1x1x1x48xf32> to vector<1x8x8x48xf32>
    %43 = arith.mulf %38, %42 : vector<1x8x8x48xf32>
    %44 = arith.addf %37, %43 : vector<1x8x8x48xf32>
    %45 = vector.extract_strided_slice %30 {offsets = [0, 0, 0, 0], sizes = [1, 8, 8, 48], strides = [1, 1, 1, 1]} : vector<1x10x8x48xf32> to vector<1x8x8x48xf32>
    %46 = vector.extract_strided_slice %31 {offsets = [2, 0, 0], sizes = [1, 1, 48], strides = [1, 1, 1]} : vector<9x1x48xf32> to vector<1x1x48xf32>
    %47 = vector.shape_cast %46 : vector<1x1x48xf32> to vector<1x48xf32>
    %48 = vector.shape_cast %47 : vector<1x48xf32> to vector<1x1x1x48xf32>
    %49 = vector.broadcast %48 : vector<1x1x1x48xf32> to vector<1x8x8x48xf32>
    %50 = arith.mulf %45, %49 : vector<1x8x8x48xf32>
    %51 = arith.addf %44, %50 : vector<1x8x8x48xf32>
    %52 = vector.extract_strided_slice %28 {offsets = [0, 1, 0, 0], sizes = [1, 8, 8, 48], strides = [1, 1, 1, 1]} : vector<1x10x8x48xf32> to vector<1x8x8x48xf32>
    %53 = vector.extract_strided_slice %31 {offsets = [3, 0, 0], sizes = [1, 1, 48], strides = [1, 1, 1]} : vector<9x1x48xf32> to vector<1x1x48xf32>
    %54 = vector.shape_cast %53 : vector<1x1x48xf32> to vector<1x48xf32>
    %55 = vector.shape_cast %54 : vector<1x48xf32> to vector<1x1x1x48xf32>
    %56 = vector.broadcast %55 : vector<1x1x1x48xf32> to vector<1x8x8x48xf32>
    %57 = arith.mulf %52, %56 : vector<1x8x8x48xf32>
    %58 = arith.addf %51, %57 : vector<1x8x8x48xf32>
    %59 = vector.extract_strided_slice %29 {offsets = [0, 1, 0, 0], sizes = [1, 8, 8, 48], strides = [1, 1, 1, 1]} : vector<1x10x8x48xf32> to vector<1x8x8x48xf32>
    %60 = vector.extract_strided_slice %31 {offsets = [4, 0, 0], sizes = [1, 1, 48], strides = [1, 1, 1]} : vector<9x1x48xf32> to vector<1x1x48xf32>
    %61 = vector.shape_cast %60 : vector<1x1x48xf32> to vector<1x48xf32>
    %62 = vector.shape_cast %61 : vector<1x48xf32> to vector<1x1x1x48xf32>
    %63 = vector.broadcast %62 : vector<1x1x1x48xf32> to vector<1x8x8x48xf32>
    %64 = arith.mulf %59, %63 : vector<1x8x8x48xf32>
    %65 = arith.addf %58, %64 : vector<1x8x8x48xf32>
    %66 = vector.extract_strided_slice %30 {offsets = [0, 1, 0, 0], sizes = [1, 8, 8, 48], strides = [1, 1, 1, 1]} : vector<1x10x8x48xf32> to vector<1x8x8x48xf32>
    %67 = vector.extract_strided_slice %31 {offsets = [5, 0, 0], sizes = [1, 1, 48], strides = [1, 1, 1]} : vector<9x1x48xf32> to vector<1x1x48xf32>
    %68 = vector.shape_cast %67 : vector<1x1x48xf32> to vector<1x48xf32>
    %69 = vector.shape_cast %68 : vector<1x48xf32> to vector<1x1x1x48xf32>
    %70 = vector.broadcast %69 : vector<1x1x1x48xf32> to vector<1x8x8x48xf32>
    %71 = arith.mulf %66, %70 : vector<1x8x8x48xf32>
    %72 = arith.addf %65, %71 : vector<1x8x8x48xf32>
    %73 = vector.extract_strided_slice %28 {offsets = [0, 2, 0, 0], sizes = [1, 8, 8, 48], strides = [1, 1, 1, 1]} : vector<1x10x8x48xf32> to vector<1x8x8x48xf32>
    %74 = vector.extract_strided_slice %31 {offsets = [6, 0, 0], sizes = [1, 1, 48], strides = [1, 1, 1]} : vector<9x1x48xf32> to vector<1x1x48xf32>
    %75 = vector.shape_cast %74 : vector<1x1x48xf32> to vector<1x48xf32>
    %76 = vector.shape_cast %75 : vector<1x48xf32> to vector<1x1x1x48xf32>
    %77 = vector.broadcast %76 : vector<1x1x1x48xf32> to vector<1x8x8x48xf32>
    %78 = arith.mulf %73, %77 : vector<1x8x8x48xf32>
    %79 = arith.addf %72, %78 : vector<1x8x8x48xf32>
    %80 = vector.extract_strided_slice %29 {offsets = [0, 2, 0, 0], sizes = [1, 8, 8, 48], strides = [1, 1, 1, 1]} : vector<1x10x8x48xf32> to vector<1x8x8x48xf32>
    %81 = vector.extract_strided_slice %31 {offsets = [7, 0, 0], sizes = [1, 1, 48], strides = [1, 1, 1]} : vector<9x1x48xf32> to vector<1x1x48xf32>
    %82 = vector.shape_cast %81 : vector<1x1x48xf32> to vector<1x48xf32>
    %83 = vector.shape_cast %82 : vector<1x48xf32> to vector<1x1x1x48xf32>
    %84 = vector.broadcast %83 : vector<1x1x1x48xf32> to vector<1x8x8x48xf32>
    %85 = arith.mulf %80, %84 : vector<1x8x8x48xf32>
    %86 = arith.addf %79, %85 : vector<1x8x8x48xf32>
    %87 = vector.extract_strided_slice %30 {offsets = [0, 2, 0, 0], sizes = [1, 8, 8, 48], strides = [1, 1, 1, 1]} : vector<1x10x8x48xf32> to vector<1x8x8x48xf32>
    %88 = vector.extract_strided_slice %31 {offsets = [8, 0, 0], sizes = [1, 1, 48], strides = [1, 1, 1]} : vector<9x1x48xf32> to vector<1x1x48xf32>
    %89 = vector.shape_cast %88 : vector<1x1x48xf32> to vector<1x48xf32>
    %90 = vector.shape_cast %89 : vector<1x48xf32> to vector<1x1x1x48xf32>
    %91 = vector.broadcast %90 : vector<1x1x1x48xf32> to vector<1x8x8x48xf32>
    %92 = arith.mulf %87, %91 : vector<1x8x8x48xf32>
    %93 = arith.addf %86, %92 : vector<1x8x8x48xf32>
    %c0_46 = arith.constant 0 : index
    %c0_47 = arith.constant 0 : index
    %94 = vector.load %arg7[%c0_46, %c0_47] : memref<1x48xf32, #tpu.memory_space<vmem>>, vector<1x48xf32>
    %95 = vector.shape_cast %94 : vector<1x48xf32> to vector<1x1x1x48xf32>
    %96 = vector.broadcast %95 : vector<1x1x1x48xf32> to vector<1x8x8x48xf32>
    %97 = arith.addf %93, %96 : vector<1x8x8x48xf32>
    %cst_48 = arith.constant 0.000000e+00 : f32
    %cst_49 = arith.constant 6.000000e+00 : f32
    %98 = vector.broadcast %cst_48 : f32 to vector<1x8x8x48xf32>
    %99 = arith.maximumf %98, %97 : vector<1x8x8x48xf32>
    %100 = vector.broadcast %cst_49 : f32 to vector<1x8x8x48xf32>
    %101 = arith.minimumf %100, %99 : vector<1x8x8x48xf32>
    %102 = vector.shape_cast %101 : vector<1x8x8x48xf32> to vector<64x48xf32>
    %103 = arith.truncf %102 : vector<64x48xf32> to vector<64x48xbf16>
    %c0_50 = arith.constant 0 : index
    %c0_51 = arith.constant 0 : index
    %104 = vector.load %arg8[%c0_50, %c0_51] : memref<48x64xbf16, #tpu.memory_space<vmem>>, vector<48x64xbf16>
    %cst_52 = arith.constant dense<0.000000e+00> : vector<64x64xf32>
    %105 = tpu.matmul %103, %104, %cst_52 {dimension_numbers = #tpu.dot_dimension_numbers<[1], [0], [0], [1], [0, 0, 1, 1], [], []>} : vector<64x48xbf16>, vector<48x64xbf16>, vector<64x64xf32> -> vector<64x64xf32>
    %c0_53 = arith.constant 0 : index
    %c0_54 = arith.constant 0 : index
    %106 = vector.load %arg9[%c0_53, %c0_54] : memref<1x64xf32, #tpu.memory_space<vmem>>, vector<1x64xf32>
    %107 = vector.broadcast %106 : vector<1x64xf32> to vector<64x64xf32>
    %108 = arith.addf %105, %107 : vector<64x64xf32>
    %cst_55 = arith.constant 0.000000e+00 : f32
    %cst_56 = arith.constant 6.000000e+00 : f32
    %109 = vector.broadcast %cst_55 : f32 to vector<64x64xf32>
    %110 = arith.maximumf %109, %108 : vector<64x64xf32>
    %111 = vector.broadcast %cst_56 : f32 to vector<64x64xf32>
    %112 = arith.minimumf %111, %110 : vector<64x64xf32>
    %113 = vector.shape_cast %112 : vector<64x64xf32> to vector<1x64x64xf32>
    %cst_57 = arith.constant dense<0.000000e+00> : vector<1x64xf32>
    %114 = vector.multi_reduction <add>, %113, %cst_57 [1] : vector<1x64x64xf32> to vector<1x64xf32>
    %cst_58 = arith.constant 6.400000e+01 : f32
    %115 = vector.broadcast %cst_58 : f32 to vector<1x64xf32>
    %116 = arith.divf %114, %115 : vector<1x64xf32>
    %117 = arith.truncf %116 : vector<1x64xf32> to vector<1x64xbf16>
    %c0_59 = arith.constant 0 : index
    %c0_60 = arith.constant 0 : index
    %118 = vector.load %arg10[%c0_59, %c0_60] : memref<64x18xbf16, #tpu.memory_space<vmem>>, vector<64x18xbf16>
    %cst_61 = arith.constant dense<0.000000e+00> : vector<1x18xf32>
    %119 = tpu.matmul %117, %118, %cst_61 {dimension_numbers = #tpu.dot_dimension_numbers<[1], [0], [0], [1], [0, 0, 1, 1], [], []>} : vector<1x64xbf16>, vector<64x18xbf16>, vector<1x18xf32> -> vector<1x18xf32>
    %c0_62 = arith.constant 0 : index
    %c0_63 = arith.constant 0 : index
    %120 = vector.load %arg11[%c0_62, %c0_63] : memref<1x18xf32, #tpu.memory_space<vmem>>, vector<1x18xf32>
    %121 = arith.addf %119, %120 : vector<1x18xf32>
    %122 = vector.shape_cast %121 : vector<1x18xf32> to vector<1x1x18xf32>
    %c0_64 = arith.constant 0 : index
    %c0_65 = arith.constant 0 : index
    %123 = vector.load %arg12[%c0_64, %c0_65] : memref<6x18xf32, #tpu.memory_space<vmem>>, vector<6x18xf32>
    %124 = vector.shape_cast %123 : vector<6x18xf32> to vector<1x6x18xf32>
    %125 = vector.broadcast %122 : vector<1x1x18xf32> to vector<1x6x18xf32>
    %126 = arith.mulf %125, %124 : vector<1x6x18xf32>
    %127 = vector.shape_cast %126 : vector<1x6x18xf32> to vector<6x18xf32>
    %128 = arith.truncf %127 : vector<6x18xf32> to vector<6x18xbf16>
    %c0_66 = arith.constant 0 : index
    %c0_67 = arith.constant 0 : index
    %129 = vector.load %arg13[%c0_66, %c0_67] : memref<18x32xbf16, #tpu.memory_space<vmem>>, vector<18x32xbf16>
    %cst_68 = arith.constant dense<0.000000e+00> : vector<6x32xf32>
    %130 = tpu.matmul %128, %129, %cst_68 {dimension_numbers = #tpu.dot_dimension_numbers<[1], [0], [0], [1], [0, 0, 1, 1], [], []>} : vector<6x18xbf16>, vector<18x32xbf16>, vector<6x32xf32> -> vector<6x32xf32>
    %c0_69 = arith.constant 0 : index
    %c0_70 = arith.constant 0 : index
    %131 = vector.load %arg14[%c0_69, %c0_70] : memref<1x32xf32, #tpu.memory_space<vmem>>, vector<1x32xf32>
    %132 = vector.broadcast %131 : vector<1x32xf32> to vector<6x32xf32>
    %133 = arith.addf %130, %132 : vector<6x32xf32>
    %cst_71 = arith.constant 0.000000e+00 : f32
    %134 = vector.broadcast %cst_71 : f32 to vector<6x32xf32>
    %135 = arith.maximumf %133, %134 : vector<6x32xf32>
    %136 = arith.truncf %135 : vector<6x32xf32> to vector<6x32xbf16>
    %c0_72 = arith.constant 0 : index
    %c0_73 = arith.constant 0 : index
    %137 = vector.load %arg15[%c0_72, %c0_73] : memref<32x32xbf16, #tpu.memory_space<vmem>>, vector<32x32xbf16>
    %cst_74 = arith.constant dense<0.000000e+00> : vector<6x32xf32>
    %138 = tpu.matmul %136, %137, %cst_74 {dimension_numbers = #tpu.dot_dimension_numbers<[1], [0], [0], [1], [0, 0, 1, 1], [], []>} : vector<6x32xbf16>, vector<32x32xbf16>, vector<6x32xf32> -> vector<6x32xf32>
    %c0_75 = arith.constant 0 : index
    %c0_76 = arith.constant 0 : index
    %139 = vector.load %arg16[%c0_75, %c0_76] : memref<1x32xf32, #tpu.memory_space<vmem>>, vector<1x32xf32>
    %140 = vector.broadcast %139 : vector<1x32xf32> to vector<6x32xf32>
    %141 = arith.addf %138, %140 : vector<6x32xf32>
    %cst_77 = arith.constant 0.000000e+00 : f32
    %142 = vector.broadcast %cst_77 : f32 to vector<6x32xf32>
    %143 = arith.maximumf %141, %142 : vector<6x32xf32>
    %144 = arith.truncf %143 : vector<6x32xf32> to vector<6x32xbf16>
    %c0_78 = arith.constant 0 : index
    %c0_79 = arith.constant 0 : index
    %145 = vector.load %arg17[%c0_78, %c0_79] : memref<32x32xbf16, #tpu.memory_space<vmem>>, vector<32x32xbf16>
    %cst_80 = arith.constant dense<0.000000e+00> : vector<6x32xf32>
    %146 = tpu.matmul %144, %145, %cst_80 {dimension_numbers = #tpu.dot_dimension_numbers<[1], [0], [0], [1], [0, 0, 1, 1], [], []>} : vector<6x32xbf16>, vector<32x32xbf16>, vector<6x32xf32> -> vector<6x32xf32>
    %c0_81 = arith.constant 0 : index
    %c0_82 = arith.constant 0 : index
    %147 = vector.load %arg18[%c0_81, %c0_82] : memref<1x32xf32, #tpu.memory_space<vmem>>, vector<1x32xf32>
    %148 = vector.broadcast %147 : vector<1x32xf32> to vector<6x32xf32>
    %149 = arith.addf %146, %148 : vector<6x32xf32>
    %cst_83 = arith.constant 0.000000e+00 : f32
    %150 = vector.broadcast %cst_83 : f32 to vector<6x32xf32>
    %151 = arith.maximumf %149, %150 : vector<6x32xf32>
    %152 = arith.truncf %151 : vector<6x32xf32> to vector<6x32xbf16>
    %c0_84 = arith.constant 0 : index
    %c0_85 = arith.constant 0 : index
    %153 = vector.load %arg19[%c0_84, %c0_85] : memref<32x64xbf16, #tpu.memory_space<vmem>>, vector<32x64xbf16>
    %cst_86 = arith.constant dense<0.000000e+00> : vector<6x64xf32>
    %154 = tpu.matmul %152, %153, %cst_86 {dimension_numbers = #tpu.dot_dimension_numbers<[1], [0], [0], [1], [0, 0, 1, 1], [], []>} : vector<6x32xbf16>, vector<32x64xbf16>, vector<6x64xf32> -> vector<6x64xf32>
    %c0_87 = arith.constant 0 : index
    %c0_88 = arith.constant 0 : index
    %155 = vector.load %arg20[%c0_87, %c0_88] : memref<1x64xf32, #tpu.memory_space<vmem>>, vector<1x64xf32>
    %156 = vector.broadcast %155 : vector<1x64xf32> to vector<6x64xf32>
    %157 = arith.addf %154, %156 : vector<6x64xf32>
    %cst_89 = arith.constant 0.000000e+00 : f32
    %158 = vector.broadcast %cst_89 : f32 to vector<6x64xf32>
    %159 = arith.maximumf %157, %158 : vector<6x64xf32>
    %160 = arith.truncf %159 : vector<6x64xf32> to vector<6x64xbf16>
    %c0_90 = arith.constant 0 : index
    %c0_91 = arith.constant 0 : index
    %161 = vector.load %arg21[%c0_90, %c0_91] : memref<64x128xbf16, #tpu.memory_space<vmem>>, vector<64x128xbf16>
    %cst_92 = arith.constant dense<0.000000e+00> : vector<6x128xf32>
    %162 = tpu.matmul %160, %161, %cst_92 {dimension_numbers = #tpu.dot_dimension_numbers<[1], [0], [0], [1], [0, 0, 1, 1], [], []>} : vector<6x64xbf16>, vector<64x128xbf16>, vector<6x128xf32> -> vector<6x128xf32>
    %c0_93 = arith.constant 0 : index
    %c0_94 = arith.constant 0 : index
    %163 = vector.load %arg22[%c0_93, %c0_94] : memref<1x128xf32, #tpu.memory_space<vmem>>, vector<1x128xf32>
    %164 = vector.broadcast %163 : vector<1x128xf32> to vector<6x128xf32>
    %165 = arith.addf %162, %164 : vector<6x128xf32>
    %cst_95 = arith.constant 0.000000e+00 : f32
    %166 = vector.broadcast %cst_95 : f32 to vector<6x128xf32>
    %167 = arith.maximumf %165, %166 : vector<6x128xf32>
    %168 = vector.shape_cast %167 : vector<6x128xf32> to vector<1x6x128xf32>
    %cst_96 = arith.constant dense<0xFF800000> : vector<1x128xf32>
    %169 = vector.multi_reduction <maximumf>, %168, %cst_96 [1] : vector<1x6x128xf32> to vector<1x128xf32>
    %c0_97 = arith.constant 0 : index
    %c0_98 = arith.constant 0 : index
    %170 = vector.load %arg23[%c0_97, %c0_98] : memref<32x64xbf16, #tpu.memory_space<vmem>>, vector<32x64xbf16>
    %cst_99 = arith.constant dense<0.000000e+00> : vector<6x64xf32>
    %171 = tpu.matmul %144, %170, %cst_99 {dimension_numbers = #tpu.dot_dimension_numbers<[1], [0], [0], [1], [0, 0, 1, 1], [], []>} : vector<6x32xbf16>, vector<32x64xbf16>, vector<6x64xf32> -> vector<6x64xf32>
    %172 = vector.shape_cast %171 : vector<6x64xf32> to vector<1x6x64xf32>
    %173 = arith.truncf %169 : vector<1x128xf32> to vector<1x128xbf16>
    %c0_100 = arith.constant 0 : index
    %c0_101 = arith.constant 0 : index
    %174 = vector.load %arg24[%c0_100, %c0_101] : memref<128x64xbf16, #tpu.memory_space<vmem>>, vector<128x64xbf16>
    %cst_102 = arith.constant dense<0.000000e+00> : vector<1x64xf32>
    %175 = tpu.matmul %173, %174, %cst_102 {dimension_numbers = #tpu.dot_dimension_numbers<[1], [0], [0], [1], [0, 0, 1, 1], [], []>} : vector<1x128xbf16>, vector<128x64xbf16>, vector<1x64xf32> -> vector<1x64xf32>
    %176 = vector.shape_cast %175 : vector<1x64xf32> to vector<1x1x64xf32>
    %177 = vector.broadcast %176 : vector<1x1x64xf32> to vector<1x6x64xf32>
    %178 = arith.addf %172, %177 : vector<1x6x64xf32>
    %c0_103 = arith.constant 0 : index
    %c0_104 = arith.constant 0 : index
    %179 = vector.load %arg25[%c0_103, %c0_104] : memref<64x64xbf16, #tpu.memory_space<vmem>>, vector<64x64xbf16>
    %cst_105 = arith.constant dense<0.000000e+00> : vector<1x64xf32>
    %180 = tpu.matmul %117, %179, %cst_105 {dimension_numbers = #tpu.dot_dimension_numbers<[1], [0], [0], [1], [0, 0, 1, 1], [], []>} : vector<1x64xbf16>, vector<64x64xbf16>, vector<1x64xf32> -> vector<1x64xf32>
    %181 = vector.shape_cast %180 : vector<1x64xf32> to vector<1x1x64xf32>
    %182 = vector.broadcast %181 : vector<1x1x64xf32> to vector<1x6x64xf32>
    %183 = arith.addf %178, %182 : vector<1x6x64xf32>
    %c0_106 = arith.constant 0 : index
    %c0_107 = arith.constant 0 : index
    %184 = vector.load %arg26[%c0_106, %c0_107] : memref<1x64xf32, #tpu.memory_space<vmem>>, vector<1x64xf32>
    %185 = vector.shape_cast %184 : vector<1x64xf32> to vector<1x1x64xf32>
    %186 = vector.broadcast %185 : vector<1x1x64xf32> to vector<1x6x64xf32>
    %187 = arith.addf %183, %186 : vector<1x6x64xf32>
    %188 = vector.shape_cast %187 : vector<1x6x64xf32> to vector<6x64xf32>
    %cst_108 = arith.constant 0.000000e+00 : f32
    %189 = vector.broadcast %cst_108 : f32 to vector<6x64xf32>
    %190 = arith.maximumf %188, %189 : vector<6x64xf32>
    %191 = arith.truncf %190 : vector<6x64xf32> to vector<6x64xbf16>
    %c0_109 = arith.constant 0 : index
    %c0_110 = arith.constant 0 : index
    %192 = vector.load %arg27[%c0_109, %c0_110] : memref<64x32xbf16, #tpu.memory_space<vmem>>, vector<64x32xbf16>
    %cst_111 = arith.constant dense<0.000000e+00> : vector<6x32xf32>
    %193 = tpu.matmul %191, %192, %cst_111 {dimension_numbers = #tpu.dot_dimension_numbers<[1], [0], [0], [1], [0, 0, 1, 1], [], []>} : vector<6x64xbf16>, vector<64x32xbf16>, vector<6x32xf32> -> vector<6x32xf32>
    %c0_112 = arith.constant 0 : index
    %c0_113 = arith.constant 0 : index
    %194 = vector.load %arg28[%c0_112, %c0_113] : memref<1x32xf32, #tpu.memory_space<vmem>>, vector<1x32xf32>
    %195 = vector.broadcast %194 : vector<1x32xf32> to vector<6x32xf32>
    %196 = arith.addf %193, %195 : vector<6x32xf32>
    %cst_114 = arith.constant 0.000000e+00 : f32
    %197 = vector.broadcast %cst_114 : f32 to vector<6x32xf32>
    %198 = arith.maximumf %196, %197 : vector<6x32xf32>
    %199 = arith.truncf %198 : vector<6x32xf32> to vector<6x32xbf16>
    %c0_115 = arith.constant 0 : index
    %c0_116 = arith.constant 0 : index
    %200 = vector.load %arg29[%c0_115, %c0_116] : memref<32x16xbf16, #tpu.memory_space<vmem>>, vector<32x16xbf16>
    %cst_117 = arith.constant dense<0.000000e+00> : vector<6x16xf32>
    %201 = tpu.matmul %199, %200, %cst_117 {dimension_numbers = #tpu.dot_dimension_numbers<[1], [0], [0], [1], [0, 0, 1, 1], [], []>} : vector<6x32xbf16>, vector<32x16xbf16>, vector<6x16xf32> -> vector<6x16xf32>
    %c0_118 = arith.constant 0 : index
    %c0_119 = arith.constant 0 : index
    %202 = vector.load %arg30[%c0_118, %c0_119] : memref<1x16xf32, #tpu.memory_space<vmem>>, vector<1x16xf32>
    %203 = vector.broadcast %202 : vector<1x16xf32> to vector<6x16xf32>
    %204 = arith.addf %201, %203 : vector<6x16xf32>
    %cst_120 = arith.constant 0.000000e+00 : f32
    %205 = vector.broadcast %cst_120 : f32 to vector<6x16xf32>
    %206 = arith.maximumf %204, %205 : vector<6x16xf32>
    %207 = arith.truncf %206 : vector<6x16xf32> to vector<6x16xbf16>
    %c0_121 = arith.constant 0 : index
    %c0_122 = arith.constant 0 : index
    %208 = vector.load %arg31[%c0_121, %c0_122] : memref<16x3xbf16, #tpu.memory_space<vmem>>, vector<16x3xbf16>
    %cst_123 = arith.constant dense<0.000000e+00> : vector<6x3xf32>
    %209 = tpu.matmul %207, %208, %cst_123 {dimension_numbers = #tpu.dot_dimension_numbers<[1], [0], [0], [1], [0, 0, 1, 1], [], []>} : vector<6x16xbf16>, vector<16x3xbf16>, vector<6x3xf32> -> vector<6x3xf32>
    %c0_124 = arith.constant 0 : index
    %c0_125 = arith.constant 0 : index
    %210 = vector.load %arg32[%c0_124, %c0_125] : memref<1x3xf32, #tpu.memory_space<vmem>>, vector<1x3xf32>
    %211 = vector.broadcast %210 : vector<1x3xf32> to vector<6x3xf32>
    %212 = arith.addf %209, %211 : vector<6x3xf32>
    %213 = vector.shape_cast %212 : vector<6x3xf32> to vector<1x6x3xf32>
    %c0_126 = arith.constant 0 : index
    %c0_127 = arith.constant 0 : index
    %c0_128 = arith.constant 0 : index
    %214 = vector.load %arg33[%c0_126, %c0_127, %c0_128] : memref<1x6x3xf32, #tpu.memory_space<vmem>>, vector<1x6x3xf32>
    tpu.vector_store %arg33[%c0_126, %c0_127, %c0_128], %213 {strides = array<i32>} : memref<1x6x3xf32, #tpu.memory_space<vmem>>, vector<1x6x3xf32>,
    return
  }
  func.func @transform_0(%arg0: i32) -> (i32, i32) {
    %c0_i32 = arith.constant 0 : i32
    %c0_i32_0 = arith.constant 0 : i32
    return %arg0, %c0_i32 : i32, i32
  }
  func.func @transform_1(%arg0: i32) -> (i32, i32) {
    %c0_i32 = arith.constant 0 : i32
    %c0_i32_0 = arith.constant 0 : i32
    %c0_i32_1 = arith.constant 0 : i32
    return %c0_i32, %c0_i32_0 : i32, i32
  }
  func.func @transform_2(%arg0: i32) -> (i32, i32) {
    %c0_i32 = arith.constant 0 : i32
    %c0_i32_0 = arith.constant 0 : i32
    %c0_i32_1 = arith.constant 0 : i32
    return %c0_i32, %c0_i32_0 : i32, i32
  }
  func.func @transform_3(%arg0: i32) -> (i32, i32) {
    %c0_i32 = arith.constant 0 : i32
    %c0_i32_0 = arith.constant 0 : i32
    %c0_i32_1 = arith.constant 0 : i32
    return %c0_i32, %c0_i32_0 : i32, i32
  }
  func.func @transform_4(%arg0: i32) -> (i32, i32) {
    %c0_i32 = arith.constant 0 : i32
    %c0_i32_0 = arith.constant 0 : i32
    %c0_i32_1 = arith.constant 0 : i32
    return %c0_i32, %c0_i32_0 : i32, i32
  }
  func.func @transform_5(%arg0: i32) -> (i32, i32, i32) {
    %c0_i32 = arith.constant 0 : i32
    %c0_i32_0 = arith.constant 0 : i32
    %c0_i32_1 = arith.constant 0 : i32
    %c0_i32_2 = arith.constant 0 : i32
    return %c0_i32, %c0_i32_0, %c0_i32_1 : i32, i32, i32
  }
  func.func @transform_6(%arg0: i32) -> (i32, i32) {
    %c0_i32 = arith.constant 0 : i32
    %c0_i32_0 = arith.constant 0 : i32
    %c0_i32_1 = arith.constant 0 : i32
    return %c0_i32, %c0_i32_0 : i32, i32
  }
  func.func @transform_7(%arg0: i32) -> (i32, i32) {
    %c0_i32 = arith.constant 0 : i32
    %c0_i32_0 = arith.constant 0 : i32
    %c0_i32_1 = arith.constant 0 : i32
    return %c0_i32, %c0_i32_0 : i32, i32
  }
  func.func @transform_8(%arg0: i32) -> (i32, i32) {
    %c0_i32 = arith.constant 0 : i32
    %c0_i32_0 = arith.constant 0 : i32
    %c0_i32_1 = arith.constant 0 : i32
    return %c0_i32, %c0_i32_0 : i32, i32
  }
  func.func @transform_9(%arg0: i32) -> (i32, i32) {
    %c0_i32 = arith.constant 0 : i32
    %c0_i32_0 = arith.constant 0 : i32
    %c0_i32_1 = arith.constant 0 : i32
    return %c0_i32, %c0_i32_0 : i32, i32
  }
  func.func @transform_10(%arg0: i32) -> (i32, i32) {
    %c0_i32 = arith.constant 0 : i32
    %c0_i32_0 = arith.constant 0 : i32
    %c0_i32_1 = arith.constant 0 : i32
    return %c0_i32, %c0_i32_0 : i32, i32
  }
  func.func @transform_11(%arg0: i32) -> (i32, i32) {
    %c0_i32 = arith.constant 0 : i32
    %c0_i32_0 = arith.constant 0 : i32
    %c0_i32_1 = arith.constant 0 : i32
    return %c0_i32, %c0_i32_0 : i32, i32
  }
  func.func @transform_12(%arg0: i32) -> (i32, i32) {
    %c0_i32 = arith.constant 0 : i32
    %c0_i32_0 = arith.constant 0 : i32
    %c0_i32_1 = arith.constant 0 : i32
    return %c0_i32, %c0_i32_0 : i32, i32
  }
  func.func @transform_13(%arg0: i32) -> (i32, i32) {
    %c0_i32 = arith.constant 0 : i32
    %c0_i32_0 = arith.constant 0 : i32
    %c0_i32_1 = arith.constant 0 : i32
    return %c0_i32, %c0_i32_0 : i32, i32
  }
  func.func @transform_14(%arg0: i32) -> (i32, i32) {
    %c0_i32 = arith.constant 0 : i32
    %c0_i32_0 = arith.constant 0 : i32
    %c0_i32_1 = arith.constant 0 : i32
    return %c0_i32, %c0_i32_0 : i32, i32
  }
  func.func @transform_15(%arg0: i32) -> (i32, i32) {
    %c0_i32 = arith.constant 0 : i32
    %c0_i32_0 = arith.constant 0 : i32
    %c0_i32_1 = arith.constant 0 : i32
    return %c0_i32, %c0_i32_0 : i32, i32
  }
  func.func @transform_16(%arg0: i32) -> (i32, i32) {
    %c0_i32 = arith.constant 0 : i32
    %c0_i32_0 = arith.constant 0 : i32
    %c0_i32_1 = arith.constant 0 : i32
    return %c0_i32, %c0_i32_0 : i32, i32
  }
  func.func @transform_17(%arg0: i32) -> (i32, i32) {
    %c0_i32 = arith.constant 0 : i32
    %c0_i32_0 = arith.constant 0 : i32
    %c0_i32_1 = arith.constant 0 : i32
    return %c0_i32, %c0_i32_0 : i32, i32
  }
  func.func @transform_18(%arg0: i32) -> (i32, i32) {
    %c0_i32 = arith.constant 0 : i32
    %c0_i32_0 = arith.constant 0 : i32
    %c0_i32_1 = arith.constant 0 : i32
    return %c0_i32, %c0_i32_0 : i32, i32
  }
  func.func @transform_19(%arg0: i32) -> (i32, i32) {
    %c0_i32 = arith.constant 0 : i32
    %c0_i32_0 = arith.constant 0 : i32
    %c0_i32_1 = arith.constant 0 : i32
    return %c0_i32, %c0_i32_0 : i32, i32
  }
  func.func @transform_20(%arg0: i32) -> (i32, i32) {
    %c0_i32 = arith.constant 0 : i32
    %c0_i32_0 = arith.constant 0 : i32
    %c0_i32_1 = arith.constant 0 : i32
    return %c0_i32, %c0_i32_0 : i32, i32
  }
  func.func @transform_21(%arg0: i32) -> (i32, i32) {
    %c0_i32 = arith.constant 0 : i32
    %c0_i32_0 = arith.constant 0 : i32
    %c0_i32_1 = arith.constant 0 : i32
    return %c0_i32, %c0_i32_0 : i32, i32
  }
  func.func @transform_22(%arg0: i32) -> (i32, i32) {
    %c0_i32 = arith.constant 0 : i32
    %c0_i32_0 = arith.constant 0 : i32
    %c0_i32_1 = arith.constant 0 : i32
    return %c0_i32, %c0_i32_0 : i32, i32
  }
  func.func @transform_23(%arg0: i32) -> (i32, i32) {
    %c0_i32 = arith.constant 0 : i32
    %c0_i32_0 = arith.constant 0 : i32
    %c0_i32_1 = arith.constant 0 : i32
    return %c0_i32, %c0_i32_0 : i32, i32
  }
  func.func @transform_24(%arg0: i32) -> (i32, i32) {
    %c0_i32 = arith.constant 0 : i32
    %c0_i32_0 = arith.constant 0 : i32
    %c0_i32_1 = arith.constant 0 : i32
    return %c0_i32, %c0_i32_0 : i32, i32
  }
  func.func @transform_25(%arg0: i32) -> (i32, i32) {
    %c0_i32 = arith.constant 0 : i32
    %c0_i32_0 = arith.constant 0 : i32
    %c0_i32_1 = arith.constant 0 : i32
    return %c0_i32, %c0_i32_0 : i32, i32
  }
  func.func @transform_26(%arg0: i32) -> (i32, i32) {
    %c0_i32 = arith.constant 0 : i32
    %c0_i32_0 = arith.constant 0 : i32
    %c0_i32_1 = arith.constant 0 : i32
    return %c0_i32, %c0_i32_0 : i32, i32
  }
  func.func @transform_27(%arg0: i32) -> (i32, i32) {
    %c0_i32 = arith.constant 0 : i32
    %c0_i32_0 = arith.constant 0 : i32
    %c0_i32_1 = arith.constant 0 : i32
    return %c0_i32, %c0_i32_0 : i32, i32
  }
  func.func @transform_28(%arg0: i32) -> (i32, i32) {
    %c0_i32 = arith.constant 0 : i32
    %c0_i32_0 = arith.constant 0 : i32
    %c0_i32_1 = arith.constant 0 : i32
    return %c0_i32, %c0_i32_0 : i32, i32
  }
  func.func @transform_29(%arg0: i32) -> (i32, i32) {
    %c0_i32 = arith.constant 0 : i32
    %c0_i32_0 = arith.constant 0 : i32
    %c0_i32_1 = arith.constant 0 : i32
    return %c0_i32, %c0_i32_0 : i32, i32
  }
  func.func @transform_30(%arg0: i32) -> (i32, i32) {
    %c0_i32 = arith.constant 0 : i32
    %c0_i32_0 = arith.constant 0 : i32
    %c0_i32_1 = arith.constant 0 : i32
    return %c0_i32, %c0_i32_0 : i32, i32
  }
  func.func @transform_31(%arg0: i32) -> (i32, i32) {
    %c0_i32 = arith.constant 0 : i32
    %c0_i32_0 = arith.constant 0 : i32
    %c0_i32_1 = arith.constant 0 : i32
    return %c0_i32, %c0_i32_0 : i32, i32
  }
  func.func @transform_32(%arg0: i32) -> (i32, i32, i32) {
    %c0_i32 = arith.constant 0 : i32
    %c0_i32_0 = arith.constant 0 : i32
    %c0_i32_1 = arith.constant 0 : i32
    return %arg0, %c0_i32, %c0_i32_0 : i32, i32, i32
  }
}

</mosaic_0001>

<llo_original>
// kernel: _lambda_.1
$region0: #{_lambda_.1}
  #allocation0 [shape = 'u32[]', space=smem, size = 0x4, offset = 0x4, fixed_abs, tag = 'smem constant byte address 0x4 - core index']
  #allocation1 [shape = 'u32[72,128]{1,0:T(1,128)}', space=vmem, size = 0x9000, scoped, tag = 'internal scratch']
  #allocation2 [shape = 'f32[1,10,24,48]{3,2,1,0:T(8,128)}', space=vmem, size = 0x1e000, scoped, tag = 'scratch operand']
  %s0 = inlined_call_operand.smem [shape: u32[33], index: -1, kind: input, shape index: {}]
  %s1 = sld [smem:[%s0]]
  %s2 = scalar_lea.smem %s0, 1
  %s3 = sld [smem:[%s2]]
  %s4 = scalar_lea.smem %s0, 2
  %s5 = sld [smem:[%s4]]
  %s6 = scalar_lea.smem %s0, 3
  %s7 = sld [smem:[%s6]]
  %s8 = scalar_lea.smem %s0, 4
  %s9 = sld [smem:[%s8]]
  %s10 = scalar_lea.smem %s0, 5
  %s11 = sld [smem:[%s10]]
  %s12 = scalar_lea.smem %s0, 6
  %s13 = sld [smem:[%s12]]
  %s14 = scalar_lea.smem %s0, 7
  %s15 = sld [smem:[%s14]]
  %s16 = scalar_lea.smem %s0, 8
  %s17 = sld [smem:[%s16]]
  %s18 = scalar_lea.smem %s0, 9
  %s19 = sld [smem:[%s18]]
  %s20 = scalar_lea.smem %s0, 10
  %s21 = sld [smem:[%s20]]
  %s22 = scalar_lea.smem %s0, 11
  %s23 = sld [smem:[%s22]]
  %s24 = scalar_lea.smem %s0, 12
  %s25 = sld [smem:[%s24]]
  %s26 = scalar_lea.smem %s0, 13
  %s27 = sld [smem:[%s26]]
  %s28 = scalar_lea.smem %s0, 14
  %s29 = sld [smem:[%s28]]
  %s30 = scalar_lea.smem %s0, 15
  %s31 = sld [smem:[%s30]]
  %s32 = scalar_lea.smem %s0, 16
  %s33 = sld [smem:[%s32]]
  %s34 = scalar_lea.smem %s0, 17
  %s35 = sld [smem:[%s34]]
  %s36 = scalar_lea.smem %s0, 18
  %s37 = sld [smem:[%s36]]
  %s38 = scalar_lea.smem %s0, 19
  %s39 = sld [smem:[%s38]]
  %s40 = scalar_lea.smem %s0, 20
  %s41 = sld [smem:[%s40]]
  %s42 = scalar_lea.smem %s0, 21
  %s43 = sld [smem:[%s42]]
  %s44 = scalar_lea.smem %s0, 22
  %s45 = sld [smem:[%s44]]
  %s46 = scalar_lea.smem %s0, 23
  %s47 = sld [smem:[%s46]]
  %s48 = scalar_lea.smem %s0, 24
  %s49 = sld [smem:[%s48]]
  %s50 = scalar_lea.smem %s0, 25
  %s51 = sld [smem:[%s50]]
  %s52 = scalar_lea.smem %s0, 26
  %s53 = sld [smem:[%s52]]
  %s54 = scalar_lea.smem %s0, 27
  %s55 = sld [smem:[%s54]]
  %s56 = scalar_lea.smem %s0, 28
  %s57 = sld [smem:[%s56]]
  %s58 = scalar_lea.smem %s0, 29
  %s59 = sld [smem:[%s58]]
  %s60 = scalar_lea.smem %s0, 30
  %s61 = sld [smem:[%s60]]
  %s62 = scalar_lea.smem %s0, 31
  %s63 = sld [smem:[%s62]]
  %s64 = scalar_lea.smem %s0, 32
  %s65 = sld [smem:[%s64]]
  %s66 = sld [smem:[#allocation0]]
  $region161: #{_lambda_.1} parent=0
    _
  %s68 = ssub.s32 1, %s66
  %s69 = scalar_select 0, %s68, %s66
  loop: start=0, step=1, limit=4
  $region2: #{_lambda_.1} parent=0 // loop_pre_header
    _
  $region3: #{_lambda_.1} parent=0 // loop_header
    %s71 = sphi 0, %s75
    %p72 = scmp.ge.s32.totalorder %s71, 4
    %s81 = sphi 0, %s83
    %s84 = sphi 0, %s81
    %s85 = sphi 0, %s84
    %s101 = sphi 0, %s85
    %s105 = sphi 0, %s105
    %s107 = sphi 0, %s105
    %s108 = sphi 0, %s107
    %s122 = sphi 0, %s108
    %s126 = sphi 0, %s126
    %s128 = sphi 0, %s126
    %s129 = sphi 0, %s128
    %s143 = sphi 0, %s129
    %s147 = sphi 0, %s147
    %s149 = sphi 0, %s147
    %s150 = sphi 0, %s149
    %s164 = sphi 0, %s150
    %s168 = sphi 0, %s168
    %s170 = sphi 0, %s168
    %s171 = sphi 0, %s170
    %s185 = sphi 0, %s171
    %s189 = sphi 0, %s189
    %s191 = sphi 0, %s189
    %s192 = sphi 0, %s191
    %s206 = sphi 0, %s192
    %s210 = sphi 0, %s210
    %s212 = sphi 0, %s210
    %s213 = sphi 0, %s212
    %s227 = sphi 0, %s213
    %s231 = sphi 0, %s231
    %s233 = sphi 0, %s231
    %s234 = sphi 0, %s233
    %s248 = sphi 0, %s234
    %s252 = sphi 0, %s252
    %s254 = sphi 0, %s252
    %s255 = sphi 0, %s254
    %s269 = sphi 0, %s255
    %s273 = sphi 0, %s273
    %s275 = sphi 0, %s273
    %s276 = sphi 0, %s275
    %s290 = sphi 0, %s276
    %s294 = sphi 0, %s294
    %s296 = sphi 0, %s294
    %s297 = sphi 0, %s296
    %s311 = sphi 0, %s297
    %s315 = sphi 0, %s315
    %s317 = sphi 0, %s315
    %s318 = sphi 0, %s317
    %s332 = sphi 0, %s318
    %s336 = sphi 0, %s336
    %s338 = sphi 0, %s336
    %s339 = sphi 0, %s338
    %s353 = sphi 0, %s339
    %s357 = sphi 0, %s357
    %s359 = sphi 0, %s357
    %s360 = sphi 0, %s359
    %s374 = sphi 0, %s360
    %s378 = sphi 0, %s378
    %s380 = sphi 0, %s378
    %s381 = sphi 0, %s380
    %s395 = sphi 0, %s381
    %s399 = sphi 0, %s399
    %s401 = sphi 0, %s399
    %s402 = sphi 0, %s401
    %s416 = sphi 0, %s402
    %s420 = sphi 0, %s420
    %s422 = sphi 0, %s420
    %s423 = sphi 0, %s422
    %s437 = sphi 0, %s423
    %s441 = sphi 0, %s441
    %s443 = sphi 0, %s441
    %s444 = sphi 0, %s443
    %s458 = sphi 0, %s444
    %s462 = sphi 0, %s462
    %s464 = sphi 0, %s462
    %s465 = sphi 0, %s464
    %s479 = sphi 0, %s465
    %s483 = sphi 0, %s483
    %s485 = sphi 0, %s483
    %s486 = sphi 0, %s485
    %s500 = sphi 0, %s486
    %s504 = sphi 0, %s504
    %s506 = sphi 0, %s504
    %s507 = sphi 0, %s506
    %s521 = sphi 0, %s507
    %s525 = sphi 0, %s525
    %s527 = sphi 0, %s525
    %s528 = sphi 0, %s527
    %s542 = sphi 0, %s528
    %s546 = sphi 0, %s546
    %s548 = sphi 0, %s546
    %s549 = sphi 0, %s548
    %s563 = sphi 0, %s549
    %s567 = sphi 0, %s567
    %s569 = sphi 0, %s567
    %s570 = sphi 0, %s569
    %s584 = sphi 0, %s570
    %s588 = sphi 0, %s588
    %s590 = sphi 0, %s588
    %s591 = sphi 0, %s590
    %s605 = sphi 0, %s591
    %s609 = sphi 0, %s609
    %s611 = sphi 0, %s609
    %s612 = sphi 0, %s611
    %s626 = sphi 0, %s612
    %s630 = sphi 0, %s630
    %s632 = sphi 0, %s630
    %s633 = sphi 0, %s632
    %s647 = sphi 0, %s633
    %s651 = sphi 0, %s651
    %s653 = sphi 0, %s651
    %s654 = sphi 0, %s653
    %s668 = sphi 0, %s654
    %s672 = sphi 0, %s672
    %s674 = sphi 0, %s672
    %s675 = sphi 0, %s674
    %s689 = sphi 0, %s675
    %s693 = sphi 0, %s693
    %s695 = sphi 0, %s693
    %s696 = sphi 0, %s695
    %s710 = sphi 0, %s696
    %s714 = sphi 0, %s714
    %s716 = sphi 0, %s714
    %s717 = sphi 0, %s716
    %s731 = sphi 0, %s717
    %s735 = sphi 0, %s735
    %s737 = sphi 0, %s735
    %s738 = sphi 0, %s737
    %s752 = sphi 0, %s738
    %s758 = sphi 0, %s760
    %s761 = sphi 0, %s758
    %s762 = sphi 0, %s761
    %s778 = sphi 0, %s762
  $region4: #{_lambda_.1} parent=0 // loop_header_branch
    %74 = sbr.rel (%p72) target = $region8
  $region5: #{_lambda_.1} parent=0 // loop_body
    %s76 = ssub.s32 %s71, 1
    %s77 = ssub.s32 %s71, 2
    %s78 = sadd.s32 %s71, 1
    %s79 = ssub.s32 %s71, %s78
    %p80 = scmp.eq.s32.totalorder %s79, 0
    %s82 = sadd.s32 %s81, 1
    %s83 = scalar_select %p80, %s81, %s82
    %p86 = pneg %p80
    %p87 = scmp.eq.s32.totalorder %s71, 1
    %p88 = por %p86, %p87
    %p89 = scmp.ne.s32.totalorder %s81, %s84
    %p90 = scmp.eq.s32.totalorder %s71, 0
    %p91 = por %p89, %p90
    %p92 = scmp.ne.s32.totalorder %s81, %s84
    %p93 = scmp.eq.s32.totalorder %s76, 1
    %p94 = por %p92, %p93
    %p95 = scmp.ne.s32.totalorder %s84, %s85
    %p96 = scmp.eq.s32.totalorder %s76, 0
    %p97 = por %p95, %p96
    %p98 = scmp.ne.s32.totalorder %s84, %s85
    %p99 = scmp.eq.s32.totalorder %s77, 1
    %p100 = por %p98, %p99
    %p102 = scmp.ne.s32.totalorder %s85, %s101
    %p103 = scmp.eq.s32.totalorder %s77, 0
    %p104 = por %p102, %p103
    %s106 = sadd.s32 %s105, 1
    %p109 = scmp.eq.s32.totalorder %s71, 1
    %p110 = scmp.ne.s32.totalorder %s105, %s107
    %p111 = scmp.eq.s32.totalorder %s71, 0
    %p112 = por %p110, %p111
    %p113 = scmp.ne.s32.totalorder %s105, %s107
    %p114 = scmp.eq.s32.totalorder %s76, 1
    %p115 = por %p113, %p114
    %p116 = scmp.ne.s32.totalorder %s107, %s108
    %p117 = scmp.eq.s32.totalorder %s76, 0
    %p118 = por %p116, %p117
    %p119 = scmp.ne.s32.totalorder %s107, %s108
    %p120 = scmp.eq.s32.totalorder %s77, 1
    %p121 = por %p119, %p120
    %p123 = scmp.ne.s32.totalorder %s108, %s122
    %p124 = scmp.eq.s32.totalorder %s77, 0
    %p125 = por %p123, %p124
    %s127 = sadd.s32 %s126, 1
    %p130 = scmp.eq.s32.totalorder %s71, 1
    %p131 = scmp.ne.s32.totalorder %s126, %s128
    %p132 = scmp.eq.s32.totalorder %s71, 0
    %p133 = por %p131, %p132
    %p134 = scmp.ne.s32.totalorder %s126, %s128
    %p135 = scmp.eq.s32.totalorder %s76, 1
    %p136 = por %p134, %p135
    %p137 = scmp.ne.s32.totalorder %s128, %s129
    %p138 = scmp.eq.s32.totalorder %s76, 0
    %p139 = por %p137, %p138
    %p140 = scmp.ne.s32.totalorder %s128, %s129
    %p141 = scmp.eq.s32.totalorder %s77, 1
    %p142 = por %p140, %p141
    %p144 = scmp.ne.s32.totalorder %s129, %s143
    %p145 = scmp.eq.s32.totalorder %s77, 0
    %p146 = por %p144, %p145
    %s148 = sadd.s32 %s147, 1
    %p151 = scmp.eq.s32.totalorder %s71, 1
    %p152 = scmp.ne.s32.totalorder %s147, %s149
    %p153 = scmp.eq.s32.totalorder %s71, 0
    %p154 = por %p152, %p153
    %p155 = scmp.ne.s32.totalorder %s147, %s149
    %p156 = scmp.eq.s32.totalorder %s76, 1
    %p157 = por %p155, %p156
    %p158 = scmp.ne.s32.totalorder %s149, %s150
    %p159 = scmp.eq.s32.totalorder %s76, 0
    %p160 = por %p158, %p159
    %p161 = scmp.ne.s32.totalorder %s149, %s150
    %p162 = scmp.eq.s32.totalorder %s77, 1
    %p163 = por %p161, %p162
    %p165 = scmp.ne.s32.totalorder %s150, %s164
    %p166 = scmp.eq.s32.totalorder %s77, 0
    %p167 = por %p165, %p166
    %s169 = sadd.s32 %s168, 1
    %p172 = scmp.eq.s32.totalorder %s71, 1
    %p173 = scmp.ne.s32.totalorder %s168, %s170
    %p174 = scmp.eq.s32.totalorder %s71, 0
    %p175 = por %p173, %p174
    %p176 = scmp.ne.s32.totalorder %s168, %s170
    %p177 = scmp.eq.s32.totalorder %s76, 1
    %p178 = por %p176, %p177
    %p179 = scmp.ne.s32.totalorder %s170, %s171
    %p180 = scmp.eq.s32.totalorder %s76, 0
    %p181 = por %p179, %p180
    %p182 = scmp.ne.s32.totalorder %s170, %s171
    %p183 = scmp.eq.s32.totalorder %s77, 1
    %p184 = por %p182, %p183
    %p186 = scmp.ne.s32.totalorder %s171, %s185
    %p187 = scmp.eq.s32.totalorder %s77, 0
    %p188 = por %p186, %p187
    %s190 = sadd.s32 %s189, 1
    %p193 = scmp.eq.s32.totalorder %s71, 1
    %p194 = scmp.ne.s32.totalorder %s189, %s191
    %p195 = scmp.eq.s32.totalorder %s71, 0
    %p196 = por %p194, %p195
    %p197 = scmp.ne.s32.totalorder %s189, %s191
    %p198 = scmp.eq.s32.totalorder %s76, 1
    %p199 = por %p197, %p198
    %p200 = scmp.ne.s32.totalorder %s191, %s192
    %p201 = scmp.eq.s32.totalorder %s76, 0
    %p202 = por %p200, %p201
    %p203 = scmp.ne.s32.totalorder %s191, %s192
    %p204 = scmp.eq.s32.totalorder %s77, 1
    %p205 = por %p203, %p204
    %p207 = scmp.ne.s32.totalorder %s192, %s206
    %p208 = scmp.eq.s32.totalorder %s77, 0
    %p209 = por %p207, %p208
    %s211 = sadd.s32 %s210, 1
    %p214 = scmp.eq.s32.totalorder %s71, 1
    %p215 = scmp.ne.s32.totalorder %s210, %s212
    %p216 = scmp.eq.s32.totalorder %s71, 0
    %p217 = por %p215, %p216
    %p218 = scmp.ne.s32.totalorder %s210, %s212
    %p219 = scmp.eq.s32.totalorder %s76, 1
    %p220 = por %p218, %p219
    %p221 = scmp.ne.s32.totalorder %s212, %s213
    %p222 = scmp.eq.s32.totalorder %s76, 0
    %p223 = por %p221, %p222
    %p224 = scmp.ne.s32.totalorder %s212, %s213
    %p225 = scmp.eq.s32.totalorder %s77, 1
    %p226 = por %p224, %p225
    %p228 = scmp.ne.s32.totalorder %s213, %s227
    %p229 = scmp.eq.s32.totalorder %s77, 0
    %p230 = por %p228, %p229
    %s232 = sadd.s32 %s231, 1
    %p235 = scmp.eq.s32.totalorder %s71, 1
    %p236 = scmp.ne.s32.totalorder %s231, %s233
    %p237 = scmp.eq.s32.totalorder %s71, 0
    %p238 = por %p236, %p237
    %p239 = scmp.ne.s32.totalorder %s231, %s233
    %p240 = scmp.eq.s32.totalorder %s76, 1
    %p241 = por %p239, %p240
    %p242 = scmp.ne.s32.totalorder %s233, %s234
    %p243 = scmp.eq.s32.totalorder %s76, 0
    %p244 = por %p242, %p243
    %p245 = scmp.ne.s32.totalorder %s233, %s234
    %p246 = scmp.eq.s32.totalorder %s77, 1
    %p247 = por %p245, %p246
    %p249 = scmp.ne.s32.totalorder %s234, %s248
    %p250 = scmp.eq.s32.totalorder %s77, 0
    %p251 = por %p249, %p250
    %s253 = sadd.s32 %s252, 1
    %p256 = scmp.eq.s32.totalorder %s71, 1
    %p257 = scmp.ne.s32.totalorder %s252, %s254
    %p258 = scmp.eq.s32.totalorder %s71, 0
    %p259 = por %p257, %p258
    %p260 = scmp.ne.s32.totalorder %s252, %s254
    %p261 = scmp.eq.s32.totalorder %s76, 1
    %p262 = por %p260, %p261
    %p263 = scmp.ne.s32.totalorder %s254, %s255
    %p264 = scmp.eq.s32.totalorder %s76, 0
    %p265 = por %p263, %p264
    %p266 = scmp.ne.s32.totalorder %s254, %s255
    %p267 = scmp.eq.s32.totalorder %s77, 1
    %p268 = por %p266, %p267
    %p270 = scmp.ne.s32.totalorder %s255, %s269
    %p271 = scmp.eq.s32.totalorder %s77, 0
    %p272 = por %p270, %p271
    %s274 = sadd.s32 %s273, 1
    %p277 = scmp.eq.s32.totalorder %s71, 1
    %p278 = scmp.ne.s32.totalorder %s273, %s275
    %p279 = scmp.eq.s32.totalorder %s71, 0
    %p280 = por %p278, %p279
    %p281 = scmp.ne.s32.totalorder %s273, %s275
    %p282 = scmp.eq.s32.totalorder %s76, 1
    %p283 = por %p281, %p282
    %p284 = scmp.ne.s32.totalorder %s275, %s276
    %p285 = scmp.eq.s32.totalorder %s76, 0
    %p286 = por %p284, %p285
    %p287 = scmp.ne.s32.totalorder %s275, %s276
    %p288 = scmp.eq.s32.totalorder %s77, 1
    %p289 = por %p287, %p288
    %p291 = scmp.ne.s32.totalorder %s276, %s290
    %p292 = scmp.eq.s32.totalorder %s77, 0
    %p293 = por %p291, %p292
    %s295 = sadd.s32 %s294, 1
    %p298 = scmp.eq.s32.totalorder %s71, 1
    %p299 = scmp.ne.s32.totalorder %s294, %s296
    %p300 = scmp.eq.s32.totalorder %s71, 0
    %p301 = por %p299, %p300
    %p302 = scmp.ne.s32.totalorder %s294, %s296
    %p303 = scmp.eq.s32.totalorder %s76, 1
    %p304 = por %p302, %p303
    %p305 = scmp.ne.s32.totalorder %s296, %s297
    %p306 = scmp.eq.s32.totalorder %s76, 0
    %p307 = por %p305, %p306
    %p308 = scmp.ne.s32.totalorder %s296, %s297
    %p309 = scmp.eq.s32.totalorder %s77, 1
    %p310 = por %p308, %p309
    %p312 = scmp.ne.s32.totalorder %s297, %s311
    %p313 = scmp.eq.s32.totalorder %s77, 0
    %p314 = por %p312, %p313
    %s316 = sadd.s32 %s315, 1
    %p319 = scmp.eq.s32.totalorder %s71, 1
    %p320 = scmp.ne.s32.totalorder %s315, %s317
    %p321 = scmp.eq.s32.totalorder %s71, 0
    %p322 = por %p320, %p321
    %p323 = scmp.ne.s32.totalorder %s315, %s317
    %p324 = scmp.eq.s32.totalorder %s76, 1
    %p325 = por %p323, %p324
    %p326 = scmp.ne.s32.totalorder %s317, %s318
    %p327 = scmp.eq.s32.totalorder %s76, 0
    %p328 = por %p326, %p327
    %p329 = scmp.ne.s32.totalorder %s317, %s318
    %p330 = scmp.eq.s32.totalorder %s77, 1
    %p331 = por %p329, %p330
    %p333 = scmp.ne.s32.totalorder %s318, %s332
    %p334 = scmp.eq.s32.totalorder %s77, 0
    %p335 = por %p333, %p334
    %s337 = sadd.s32 %s336, 1
    %p340 = scmp.eq.s32.totalorder %s71, 1
    %p341 = scmp.ne.s32.totalorder %s336, %s338
    %p342 = scmp.eq.s32.totalorder %s71, 0
    %p343 = por %p341, %p342
    %p344 = scmp.ne.s32.totalorder %s336, %s338
    %p345 = scmp.eq.s32.totalorder %s76, 1
    %p346 = por %p344, %p345
    %p347 = scmp.ne.s32.totalorder %s338, %s339
    %p348 = scmp.eq.s32.totalorder %s76, 0
    %p349 = por %p347, %p348
    %p350 = scmp.ne.s32.totalorder %s338, %s339
    %p351 = scmp.eq.s32.totalorder %s77, 1
    %p352 = por %p350, %p351
    %p354 = scmp.ne.s32.totalorder %s339, %s353
    %p355 = scmp.eq.s32.totalorder %s77, 0
    %p356 = por %p354, %p355
    %s358 = sadd.s32 %s357, 1
    %p361 = scmp.eq.s32.totalorder %s71, 1
    %p362 = scmp.ne.s32.totalorder %s357, %s359
    %p363 = scmp.eq.s32.totalorder %s71, 0
    %p364 = por %p362, %p363
    %p365 = scmp.ne.s32.totalorder %s357, %s359
    %p366 = scmp.eq.s32.totalorder %s76, 1
    %p367 = por %p365, %p366
    %p368 = scmp.ne.s32.totalorder %s359, %s360
    %p369 = scmp.eq.s32.totalorder %s76, 0
    %p370 = por %p368, %p369
    %p371 = scmp.ne.s32.totalorder %s359, %s360
    %p372 = scmp.eq.s32.totalorder %s77, 1
    %p373 = por %p371, %p372
    %p375 = scmp.ne.s32.totalorder %s360, %s374
    %p376 = scmp.eq.s32.totalorder %s77, 0
    %p377 = por %p375, %p376
    %s379 = sadd.s32 %s378, 1
    %p382 = scmp.eq.s32.totalorder %s71, 1
    %p383 = scmp.ne.s32.totalorder %s378, %s380
    %p384 = scmp.eq.s32.totalorder %s71, 0
    %p385 = por %p383, %p384
    %p386 = scmp.ne.s32.totalorder %s378, %s380
    %p387 = scmp.eq.s32.totalorder %s76, 1
    %p388 = por %p386, %p387
    %p389 = scmp.ne.s32.totalorder %s380, %s381
    %p390 = scmp.eq.s32.totalorder %s76, 0
    %p391 = por %p389, %p390
    %p392 = scmp.ne.s32.totalorder %s380, %s381
    %p393 = scmp.eq.s32.totalorder %s77, 1
    %p394 = por %p392, %p393
    %p396 = scmp.ne.s32.totalorder %s381, %s395
    %p397 = scmp.eq.s32.totalorder %s77, 0
    %p398 = por %p396, %p397
    %s400 = sadd.s32 %s399, 1
    %p403 = scmp.eq.s32.totalorder %s71, 1
    %p404 = scmp.ne.s32.totalorder %s399, %s401
    %p405 = scmp.eq.s32.totalorder %s71, 0
    %p406 = por %p404, %p405
    %p407 = scmp.ne.s32.totalorder %s399, %s401
    %p408 = scmp.eq.s32.totalorder %s76, 1
    %p409 = por %p407, %p408
    %p410 = scmp.ne.s32.totalorder %s401, %s402
    %p411 = scmp.eq.s32.totalorder %s76, 0
    %p412 = por %p410, %p411
    %p413 = scmp.ne.s32.totalorder %s401, %s402
    %p414 = scmp.eq.s32.totalorder %s77, 1
    %p415 = por %p413, %p414
    %p417 = scmp.ne.s32.totalorder %s402, %s416
    %p418 = scmp.eq.s32.totalorder %s77, 0
    %p419 = por %p417, %p418
    %s421 = sadd.s32 %s420, 1
    %p424 = scmp.eq.s32.totalorder %s71, 1
    %p425 = scmp.ne.s32.totalorder %s420, %s422
    %p426 = scmp.eq.s32.totalorder %s71, 0
    %p427 = por %p425, %p426
    %p428 = scmp.ne.s32.totalorder %s420, %s422
    %p429 = scmp.eq.s32.totalorder %s76, 1
    %p430 = por %p428, %p429
    %p431 = scmp.ne.s32.totalorder %s422, %s423
    %p432 = scmp.eq.s32.totalorder %s76, 0
    %p433 = por %p431, %p432
    %p434 = scmp.ne.s32.totalorder %s422, %s423
    %p435 = scmp.eq.s32.totalorder %s77, 1
    %p436 = por %p434, %p435
    %p438 = scmp.ne.s32.totalorder %s423, %s437
    %p439 = scmp.eq.s32.totalorder %s77, 0
    %p440 = por %p438, %p439
    %s442 = sadd.s32 %s441, 1
    %p445 = scmp.eq.s32.totalorder %s71, 1
    %p446 = scmp.ne.s32.totalorder %s441, %s443
    %p447 = scmp.eq.s32.totalorder %s71, 0
    %p448 = por %p446, %p447
    %p449 = scmp.ne.s32.totalorder %s441, %s443
    %p450 = scmp.eq.s32.totalorder %s76, 1
    %p451 = por %p449, %p450
    %p452 = scmp.ne.s32.totalorder %s443, %s444
    %p453 = scmp.eq.s32.totalorder %s76, 0
    %p454 = por %p452, %p453
    %p455 = scmp.ne.s32.totalorder %s443, %s444
    %p456 = scmp.eq.s32.totalorder %s77, 1
    %p457 = por %p455, %p456
    %p459 = scmp.ne.s32.totalorder %s444, %s458
    %p460 = scmp.eq.s32.totalorder %s77, 0
    %p461 = por %p459, %p460
    %s463 = sadd.s32 %s462, 1
    %p466 = scmp.eq.s32.totalorder %s71, 1
    %p467 = scmp.ne.s32.totalorder %s462, %s464
    %p468 = scmp.eq.s32.totalorder %s71, 0
    %p469 = por %p467, %p468
    %p470 = scmp.ne.s32.totalorder %s462, %s464
    %p471 = scmp.eq.s32.totalorder %s76, 1
    %p472 = por %p470, %p471
    %p473 = scmp.ne.s32.totalorder %s464, %s465
    %p474 = scmp.eq.s32.totalorder %s76, 0
    %p475 = por %p473, %p474
    %p476 = scmp.ne.s32.totalorder %s464, %s465
    %p477 = scmp.eq.s32.totalorder %s77, 1
    %p478 = por %p476, %p477
    %p480 = scmp.ne.s32.totalorder %s465, %s479
    %p481 = scmp.eq.s32.totalorder %s77, 0
    %p482 = por %p480, %p481
    %s484 = sadd.s32 %s483, 1
    %p487 = scmp.eq.s32.totalorder %s71, 1
    %p488 = scmp.ne.s32.totalorder %s483, %s485
    %p489 = scmp.eq.s32.totalorder %s71, 0
    %p490 = por %p488, %p489
    %p491 = scmp.ne.s32.totalorder %s483, %s485
    %p492 = scmp.eq.s32.totalorder %s76, 1
    %p493 = por %p491, %p492
    %p494 = scmp.ne.s32.totalorder %s485, %s486
    %p495 = scmp.eq.s32.totalorder %s76, 0
    %p496 = por %p494, %p495
    %p497 = scmp.ne.s32.totalorder %s485, %s486
    %p498 = scmp.eq.s32.totalorder %s77, 1
    %p499 = por %p497, %p498
    %p501 = scmp.ne.s32.totalorder %s486, %s500
    %p502 = scmp.eq.s32.totalorder %s77, 0
    %p503 = por %p501, %p502
    %s505 = sadd.s32 %s504, 1
    %p508 = scmp.eq.s32.totalorder %s71, 1
    %p509 = scmp.ne.s32.totalorder %s504, %s506
    %p510 = scmp.eq.s32.totalorder %s71, 0
    %p511 = por %p509, %p510
    %p512 = scmp.ne.s32.totalorder %s504, %s506
    %p513 = scmp.eq.s32.totalorder %s76, 1
    %p514 = por %p512, %p513
    %p515 = scmp.ne.s32.totalorder %s506, %s507
    %p516 = scmp.eq.s32.totalorder %s76, 0
    %p517 = por %p515, %p516
    %p518 = scmp.ne.s32.totalorder %s506, %s507
    %p519 = scmp.eq.s32.totalorder %s77, 1
    %p520 = por %p518, %p519
    %p522 = scmp.ne.s32.totalorder %s507, %s521
    %p523 = scmp.eq.s32.totalorder %s77, 0
    %p524 = por %p522, %p523
    %s526 = sadd.s32 %s525, 1
    %p529 = scmp.eq.s32.totalorder %s71, 1
    %p530 = scmp.ne.s32.totalorder %s525, %s527
    %p531 = scmp.eq.s32.totalorder %s71, 0
    %p532 = por %p530, %p531
    %p533 = scmp.ne.s32.totalorder %s525, %s527
    %p534 = scmp.eq.s32.totalorder %s76, 1
    %p535 = por %p533, %p534
    %p536 = scmp.ne.s32.totalorder %s527, %s528
    %p537 = scmp.eq.s32.totalorder %s76, 0
    %p538 = por %p536, %p537
    %p539 = scmp.ne.s32.totalorder %s527, %s528
    %p540 = scmp.eq.s32.totalorder %s77, 1
    %p541 = por %p539, %p540
    %p543 = scmp.ne.s32.totalorder %s528, %s542
    %p544 = scmp.eq.s32.totalorder %s77, 0
    %p545 = por %p543, %p544
    %s547 = sadd.s32 %s546, 1
    %p550 = scmp.eq.s32.totalorder %s71, 1
    %p551 = scmp.ne.s32.totalorder %s546, %s548
    %p552 = scmp.eq.s32.totalorder %s71, 0
    %p553 = por %p551, %p552
    %p554 = scmp.ne.s32.totalorder %s546, %s548
    %p555 = scmp.eq.s32.totalorder %s76, 1
    %p556 = por %p554, %p555
    %p557 = scmp.ne.s32.totalorder %s548, %s549
    %p558 = scmp.eq.s32.totalorder %s76, 0
    %p559 = por %p557, %p558
    %p560 = scmp.ne.s32.totalorder %s548, %s549
    %p561 = scmp.eq.s32.totalorder %s77, 1
    %p562 = por %p560, %p561
    %p564 = scmp.ne.s32.totalorder %s549, %s563
    %p565 = scmp.eq.s32.totalorder %s77, 0
    %p566 = por %p564, %p565
    %s568 = sadd.s32 %s567, 1
    %p571 = scmp.eq.s32.totalorder %s71, 1
    %p572 = scmp.ne.s32.totalorder %s567, %s569
    %p573 = scmp.eq.s32.totalorder %s71, 0
    %p574 = por %p572, %p573
    %p575 = scmp.ne.s32.totalorder %s567, %s569
    %p576 = scmp.eq.s32.totalorder %s76, 1
    %p577 = por %p575, %p576
    %p578 = scmp.ne.s32.totalorder %s569, %s570
    %p579 = scmp.eq.s32.totalorder %s76, 0
    %p580 = por %p578, %p579
    %p581 = scmp.ne.s32.totalorder %s569, %s570
    %p582 = scmp.eq.s32.totalorder %s77, 1
    %p583 = por %p581, %p582
    %p585 = scmp.ne.s32.totalorder %s570, %s584
    %p586 = scmp.eq.s32.totalorder %s77, 0
    %p587 = por %p585, %p586
    %s589 = sadd.s32 %s588, 1
    %p592 = scmp.eq.s32.totalorder %s71, 1
    %p593 = scmp.ne.s32.totalorder %s588, %s590
    %p594 = scmp.eq.s32.totalorder %s71, 0
    %p595 = por %p593, %p594
    %p596 = scmp.ne.s32.totalorder %s588, %s590
    %p597 = scmp.eq.s32.totalorder %s76, 1
    %p598 = por %p596, %p597
    %p599 = scmp.ne.s32.totalorder %s590, %s591
    %p600 = scmp.eq.s32.totalorder %s76, 0
    %p601 = por %p599, %p600
    %p602 = scmp.ne.s32.totalorder %s590, %s591
    %p603 = scmp.eq.s32.totalorder %s77, 1
    %p604 = por %p602, %p603
    %p606 = scmp.ne.s32.totalorder %s591, %s605
    %p607 = scmp.eq.s32.totalorder %s77, 0
    %p608 = por %p606, %p607
    %s610 = sadd.s32 %s609, 1
    %p613 = scmp.eq.s32.totalorder %s71, 1
    %p614 = scmp.ne.s32.totalorder %s609, %s611
    %p615 = scmp.eq.s32.totalorder %s71, 0
    %p616 = por %p614, %p615
    %p617 = scmp.ne.s32.totalorder %s609, %s611
    %p618 = scmp.eq.s32.totalorder %s76, 1
    %p619 = por %p617, %p618
    %p620 = scmp.ne.s32.totalorder %s611, %s612
    %p621 = scmp.eq.s32.totalorder %s76, 0
    %p622 = por %p620, %p621
    %p623 = scmp.ne.s32.totalorder %s611, %s612
    %p624 = scmp.eq.s32.totalorder %s77, 1
    %p625 = por %p623, %p624
    %p627 = scmp.ne.s32.totalorder %s612, %s626
    %p628 = scmp.eq.s32.totalorder %s77, 0
    %p629 = por %p627, %p628
    %s631 = sadd.s32 %s630, 1
    %p634 = scmp.eq.s32.totalorder %s71, 1
    %p635 = scmp.ne.s32.totalorder %s630, %s632
    %p636 = scmp.eq.s32.totalorder %s71, 0
    %p637 = por %p635, %p636
    %p638 = scmp.ne.s32.totalorder %s630, %s632
    %p639 = scmp.eq.s32.totalorder %s76, 1
    %p640 = por %p638, %p639
    %p641 = scmp.ne.s32.totalorder %s632, %s633
    %p642 = scmp.eq.s32.totalorder %s76, 0
    %p643 = por %p641, %p642
    %p644 = scmp.ne.s32.totalorder %s632, %s633
    %p645 = scmp.eq.s32.totalorder %s77, 1
    %p646 = por %p644, %p645
    %p648 = scmp.ne.s32.totalorder %s633, %s647
    %p649 = scmp.eq.s32.totalorder %s77, 0
    %p650 = por %p648, %p649
    %s652 = sadd.s32 %s651, 1
    %p655 = scmp.eq.s32.totalorder %s71, 1
    %p656 = scmp.ne.s32.totalorder %s651, %s653
    %p657 = scmp.eq.s32.totalorder %s71, 0
    %p658 = por %p656, %p657
    %p659 = scmp.ne.s32.totalorder %s651, %s653
    %p660 = scmp.eq.s32.totalorder %s76, 1
    %p661 = por %p659, %p660
    %p662 = scmp.ne.s32.totalorder %s653, %s654
    %p663 = scmp.eq.s32.totalorder %s76, 0
    %p664 = por %p662, %p663
    %p665 = scmp.ne.s32.totalorder %s653, %s654
    %p666 = scmp.eq.s32.totalorder %s77, 1
    %p667 = por %p665, %p666
    %p669 = scmp.ne.s32.totalorder %s654, %s668
    %p670 = scmp.eq.s32.totalorder %s77, 0
    %p671 = por %p669, %p670
    %s673 = sadd.s32 %s672, 1
    %p676 = scmp.eq.s32.totalorder %s71, 1
    %p677 = scmp.ne.s32.totalorder %s672, %s674
    %p678 = scmp.eq.s32.totalorder %s71, 0
    %p679 = por %p677, %p678
    %p680 = scmp.ne.s32.totalorder %s672, %s674
    %p681 = scmp.eq.s32.totalorder %s76, 1
    %p682 = por %p680, %p681
    %p683 = scmp.ne.s32.totalorder %s674, %s675
    %p684 = scmp.eq.s32.totalorder %s76, 0
    %p685 = por %p683, %p684
    %p686 = scmp.ne.s32.totalorder %s674, %s675
    %p687 = scmp.eq.s32.totalorder %s77, 1
    %p688 = por %p686, %p687
    %p690 = scmp.ne.s32.totalorder %s675, %s689
    %p691 = scmp.eq.s32.totalorder %s77, 0
    %p692 = por %p690, %p691
    %s694 = sadd.s32 %s693, 1
    %p697 = scmp.eq.s32.totalorder %s71, 1
    %p698 = scmp.ne.s32.totalorder %s693, %s695
    %p699 = scmp.eq.s32.totalorder %s71, 0
    %p700 = por %p698, %p699
    %p701 = scmp.ne.s32.totalorder %s693, %s695
    %p702 = scmp.eq.s32.totalorder %s76, 1
    %p703 = por %p701, %p702
    %p704 = scmp.ne.s32.totalorder %s695, %s696
    %p705 = scmp.eq.s32.totalorder %s76, 0
    %p706 = por %p704, %p705
    %p707 = scmp.ne.s32.totalorder %s695, %s696
    %p708 = scmp.eq.s32.totalorder %s77, 1
    %p709 = por %p707, %p708
    %p711 = scmp.ne.s32.totalorder %s696, %s710
    %p712 = scmp.eq.s32.totalorder %s77, 0
    %p713 = por %p711, %p712
    %s715 = sadd.s32 %s714, 1
    %p718 = scmp.eq.s32.totalorder %s71, 1
    %p719 = scmp.ne.s32.totalorder %s714, %s716
    %p720 = scmp.eq.s32.totalorder %s71, 0
    %p721 = por %p719, %p720
    %p722 = scmp.ne.s32.totalorder %s714, %s716
    %p723 = scmp.eq.s32.totalorder %s76, 1
    %p724 = por %p722, %p723
    %p725 = scmp.ne.s32.totalorder %s716, %s717
    %p726 = scmp.eq.s32.totalorder %s76, 0
    %p727 = por %p725, %p726
    %p728 = scmp.ne.s32.totalorder %s716, %s717
    %p729 = scmp.eq.s32.totalorder %s77, 1
    %p730 = por %p728, %p729
    %p732 = scmp.ne.s32.totalorder %s717, %s731
    %p733 = scmp.eq.s32.totalorder %s77, 0
    %p734 = por %p732, %p733
    %s736 = sadd.s32 %s735, 1
    %p739 = scmp.eq.s32.totalorder %s71, 1
    %p740 = scmp.ne.s32.totalorder %s735, %s737
    %p741 = scmp.eq.s32.totalorder %s71, 0
    %p742 = por %p740, %p741
    %p743 = scmp.ne.s32.totalorder %s735, %s737
    %p744 = scmp.eq.s32.totalorder %s76, 1
    %p745 = por %p743, %p744
    %p746 = scmp.ne.s32.totalorder %s737, %s738
    %p747 = scmp.eq.s32.totalorder %s76, 0
    %p748 = por %p746, %p747
    %p749 = scmp.ne.s32.totalorder %s737, %s738
    %p750 = scmp.eq.s32.totalorder %s77, 1
    %p751 = por %p749, %p750
    %p753 = scmp.ne.s32.totalorder %s738, %s752
    %p754 = scmp.eq.s32.totalorder %s77, 0
    %p755 = por %p753, %p754
    %s756 = ssub.s32 %s71, %s78
    %p757 = scmp.eq.s32.totalorder %s756, 0
    %s759 = sadd.s32 %s758, 1
    %s760 = scalar_select %p757, %s758, %s759
    %p763 = pneg %p757
    %p764 = scmp.eq.s32.totalorder %s71, 1
    %p765 = por %p763, %p764
    %p766 = scmp.ne.s32.totalorder %s758, %s761
    %p767 = scmp.eq.s32.totalorder %s71, 0
    %p768 = por %p766, %p767
    %p769 = scmp.ne.s32.totalorder %s758, %s761
    %p770 = scmp.eq.s32.totalorder %s76, 1
    %p771 = por %p769, %p770
    %p772 = scmp.ne.s32.totalorder %s761, %s762
    %p773 = scmp.eq.s32.totalorder %s76, 0
    %p774 = por %p772, %p773
    %p775 = scmp.ne.s32.totalorder %s761, %s762
    %p776 = scmp.eq.s32.totalorder %s77, 1
    %p777 = por %p775, %p776
    %p779 = scmp.ne.s32.totalorder %s762, %s778
    %p780 = scmp.eq.s32.totalorder %s77, 0
    %p781 = por %p779, %p780
    %p782 = scmp.le.s32.totalorder 1, %s71
    %p783 = scmp.lt.s32.totalorder %s71, 3
    %p784 = pnand %p782, %p783
    %p785 = pneg %p784
    // Predicated region
    $region9: #{_lambda_.1} parent=5 // pred_check
      _
    $region10: #{_lambda_.1} parent=5 // pred_check_branch
      %787 = sbr.rel (%p784) target = $region12
    $region11: #{_lambda_.1} parent=5 // pred_region
      %s788 = ssub.s32 %s71, 1
      // Predicated region
      $region13: #{_lambda_.1} parent=11 // pred_check
        %p789 = pneg %p118
      $region14: #{_lambda_.1} parent=11 // pred_check_branch
        %791 = sbr.rel (%p789) target = $region16
      $region15: #{_lambda_.1} parent=11 // pred_region
        _
      $region16: #{_lambda_.1} parent=11 // pred_fallthru
        _
      // Predicated region
      $region17: #{_lambda_.1} parent=11 // pred_check
        %p792 = pneg %p139
      $region18: #{_lambda_.1} parent=11 // pred_check_branch
        %794 = sbr.rel (%p792) target = $region20
      $region19: #{_lambda_.1} parent=11 // pred_region
        _
      $region20: #{_lambda_.1} parent=11 // pred_fallthru
        _
      // Predicated region
      $region21: #{_lambda_.1} parent=11 // pred_check
        %p795 = pneg %p160
      $region22: #{_lambda_.1} parent=11 // pred_check_branch
        %797 = sbr.rel (%p795) target = $region24
      $region23: #{_lambda_.1} parent=11 // pred_region
        _
      $region24: #{_lambda_.1} parent=11 // pred_fallthru
        _
      // Predicated region
      $region25: #{_lambda_.1} parent=11 // pred_check
        %p798 = pneg %p181
      $region26: #{_lambda_.1} parent=11 // pred_check_branch
        %800 = sbr.rel (%p798) target = $region28
      $region27: #{_lambda_.1} parent=11 // pred_region
        _
      $region28: #{_lambda_.1} parent=11 // pred_fallthru
        _
      // Predicated region
      $region29: #{_lambda_.1} parent=11 // pred_check
        %p801 = pneg %p202
      $region30: #{_lambda_.1} parent=11 // pred_check_branch
        %803 = sbr.rel (%p801) target = $region32
      $region31: #{_lambda_.1} parent=11 // pred_region
        _
      $region32: #{_lambda_.1} parent=11 // pred_fallthru
        _
      // Predicated region
      $region33: #{_lambda_.1} parent=11 // pred_check
        %p804 = pneg %p223
      $region34: #{_lambda_.1} parent=11 // pred_check_branch
        %806 = sbr.rel (%p804) target = $region36
      $region35: #{_lambda_.1} parent=11 // pred_region
        _
      $region36: #{_lambda_.1} parent=11 // pred_fallthru
        _
      // Predicated region
      $region37: #{_lambda_.1} parent=11 // pred_check
        %p807 = pneg %p244
      $region38: #{_lambda_.1} parent=11 // pred_check_branch
        %809 = sbr.rel (%p807) target = $region40
      $region39: #{_lambda_.1} parent=11 // pred_region
        _
      $region40: #{_lambda_.1} parent=11 // pred_fallthru
        _
      // Predicated region
      $region41: #{_lambda_.1} parent=11 // pred_check
        %p810 = pneg %p265
      $region42: #{_lambda_.1} parent=11 // pred_check_branch
        %812 = sbr.rel (%p810) target = $region44
      $region43: #{_lambda_.1} parent=11 // pred_region
        _
      $region44: #{_lambda_.1} parent=11 // pred_fallthru
        _
      // Predicated region
      $region45: #{_lambda_.1} parent=11 // pred_check
        %p813 = pneg %p286
      $region46: #{_lambda_.1} parent=11 // pred_check_branch
        %815 = sbr.rel (%p813) target = $region48
      $region47: #{_lambda_.1} parent=11 // pred_region
        _
      $region48: #{_lambda_.1} parent=11 // pred_fallthru
        _
      // Predicated region
      $region49: #{_lambda_.1} parent=11 // pred_check
        %p816 = pneg %p307
      $region50: #{_lambda_.1} parent=11 // pred_check_branch
        %818 = sbr.rel (%p816) target = $region52
      $region51: #{_lambda_.1} parent=11 // pred_region
        _
      $region52: #{_lambda_.1} parent=11 // pred_fallthru
        _
      // Predicated region
      $region53: #{_lambda_.1} parent=11 // pred_check
        %p819 = pneg %p328
      $region54: #{_lambda_.1} parent=11 // pred_check_branch
        %821 = sbr.rel (%p819) target = $region56
      $region55: #{_lambda_.1} parent=11 // pred_region
        _
      $region56: #{_lambda_.1} parent=11 // pred_fallthru
        _
      // Predicated region
      $region57: #{_lambda_.1} parent=11 // pred_check
        %p822 = pneg %p349
      $region58: #{_lambda_.1} parent=11 // pred_check_branch
        %824 = sbr.rel (%p822) target = $region60
      $region59: #{_lambda_.1} parent=11 // pred_region
        _
      $region60: #{_lambda_.1} parent=11 // pred_fallthru
        _
      // Predicated region
      $region61: #{_lambda_.1} parent=11 // pred_check
        %p825 = pneg %p370
      $region62: #{_lambda_.1} parent=11 // pred_check_branch
        %827 = sbr.rel (%p825) target = $region64
      $region63: #{_lambda_.1} parent=11 // pred_region
        _
      $region64: #{_lambda_.1} parent=11 // pred_fallthru
        _
      // Predicated region
      $region65: #{_lambda_.1} parent=11 // pred_check
        %p828 = pneg %p391
      $region66: #{_lambda_.1} parent=11 // pred_check_branch
        %830 = sbr.rel (%p828) target = $region68
      $region67: #{_lambda_.1} parent=11 // pred_region
        _
      $region68: #{_lambda_.1} parent=11 // pred_fallthru
        _
      // Predicated region
      $region69: #{_lambda_.1} parent=11 // pred_check
        %p831 = pneg %p412
      $region70: #{_lambda_.1} parent=11 // pred_check_branch
        %833 = sbr.rel (%p831) target = $region72
      $region71: #{_lambda_.1} parent=11 // pred_region
        _
      $region72: #{_lambda_.1} parent=11 // pred_fallthru
        _
      // Predicated region
      $region73: #{_lambda_.1} parent=11 // pred_check
        %p834 = pneg %p433
      $region74: #{_lambda_.1} parent=11 // pred_check_branch
        %836 = sbr.rel (%p834) target = $region76
      $region75: #{_lambda_.1} parent=11 // pred_region
        _
      $region76: #{_lambda_.1} parent=11 // pred_fallthru
        _
      // Predicated region
      $region77: #{_lambda_.1} parent=11 // pred_check
        %p837 = pneg %p454
      $region78: #{_lambda_.1} parent=11 // pred_check_branch
        %839 = sbr.rel (%p837) target = $region80
      $region79: #{_lambda_.1} parent=11 // pred_region
        _
      $region80: #{_lambda_.1} parent=11 // pred_fallthru
        _
      // Predicated region
      $region81: #{_lambda_.1} parent=11 // pred_check
        %p840 = pneg %p475
      $region82: #{_lambda_.1} parent=11 // pred_check_branch
        %842 = sbr.rel (%p840) target = $region84
      $region83: #{_lambda_.1} parent=11 // pred_region
        _
      $region84: #{_lambda_.1} parent=11 // pred_fallthru
        _
      // Predicated region
      $region85: #{_lambda_.1} parent=11 // pred_check
        %p843 = pneg %p496
      $region86: #{_lambda_.1} parent=11 // pred_check_branch
        %845 = sbr.rel (%p843) target = $region88
      $region87: #{_lambda_.1} parent=11 // pred_region
        _
      $region88: #{_lambda_.1} parent=11 // pred_fallthru
        _
      // Predicated region
      $region89: #{_lambda_.1} parent=11 // pred_check
        %p846 = pneg %p517
      $region90: #{_lambda_.1} parent=11 // pred_check_branch
        %848 = sbr.rel (%p846) target = $region92
      $region91: #{_lambda_.1} parent=11 // pred_region
        _
      $region92: #{_lambda_.1} parent=11 // pred_fallthru
        _
      // Predicated region
      $region93: #{_lambda_.1} parent=11 // pred_check
        %p849 = pneg %p538
      $region94: #{_lambda_.1} parent=11 // pred_check_branch
        %851 = sbr.rel (%p849) target = $region96
      $region95: #{_lambda_.1} parent=11 // pred_region
        _
      $region96: #{_lambda_.1} parent=11 // pred_fallthru
        _
      // Predicated region
      $region97: #{_lambda_.1} parent=11 // pred_check
        %p852 = pneg %p559
      $region98: #{_lambda_.1} parent=11 // pred_check_branch
        %854 = sbr.rel (%p852) target = $region100
      $region99: #{_lambda_.1} parent=11 // pred_region
        _
      $region100: #{_lambda_.1} parent=11 // pred_fallthru
        _
      // Predicated region
      $region101: #{_lambda_.1} parent=11 // pred_check
        %p855 = pneg %p580
      $region102: #{_lambda_.1} parent=11 // pred_check_branch
        %857 = sbr.rel (%p855) target = $region104
      $region103: #{_lambda_.1} parent=11 // pred_region
        _
      $region104: #{_lambda_.1} parent=11 // pred_fallthru
        _
      // Predicated region
      $region105: #{_lambda_.1} parent=11 // pred_check
        %p858 = pneg %p601
      $region106: #{_lambda_.1} parent=11 // pred_check_branch
        %860 = sbr.rel (%p858) target = $region108
      $region107: #{_lambda_.1} parent=11 // pred_region
        _
      $region108: #{_lambda_.1} parent=11 // pred_fallthru
        _
      // Predicated region
      $region109: #{_lambda_.1} parent=11 // pred_check
        %p861 = pneg %p622
      $region110: #{_lambda_.1} parent=11 // pred_check_branch
        %863 = sbr.rel (%p861) target = $region112
      $region111: #{_lambda_.1} parent=11 // pred_region
        _
      $region112: #{_lambda_.1} parent=11 // pred_fallthru
        _
      // Predicated region
      $region113: #{_lambda_.1} parent=11 // pred_check
        %p864 = pneg %p643
      $region114: #{_lambda_.1} parent=11 // pred_check_branch
        %866 = sbr.rel (%p864) target = $region116
      $region115: #{_lambda_.1} parent=11 // pred_region
        _
      $region116: #{_lambda_.1} parent=11 // pred_fallthru
        _
      // Predicated region
      $region117: #{_lambda_.1} parent=11 // pred_check
        %p867 = pneg %p664
      $region118: #{_lambda_.1} parent=11 // pred_check_branch
        %869 = sbr.rel (%p867) target = $region120
      $region119: #{_lambda_.1} parent=11 // pred_region
        _
      $region120: #{_lambda_.1} parent=11 // pred_fallthru
        _
      // Predicated region
      $region121: #{_lambda_.1} parent=11 // pred_check
        %p870 = pneg %p685
      $region122: #{_lambda_.1} parent=11 // pred_check_branch
        %872 = sbr.rel (%p870) target = $region124
      $region123: #{_lambda_.1} parent=11 // pred_region
        _
      $region124: #{_lambda_.1} parent=11 // pred_fallthru
        _
      // Predicated region
      $region125: #{_lambda_.1} parent=11 // pred_check
        %p873 = pneg %p706
      $region126: #{_lambda_.1} parent=11 // pred_check_branch
        %875 = sbr.rel (%p873) target = $region128
      $region127: #{_lambda_.1} parent=11 // pred_region
        _
      $region128: #{_lambda_.1} parent=11 // pred_fallthru
        _
      // Predicated region
      $region129: #{_lambda_.1} parent=11 // pred_check
        %p876 = pneg %p727
      $region130: #{_lambda_.1} parent=11 // pred_check_branch
        %878 = sbr.rel (%p876) target = $region132
      $region131: #{_lambda_.1} parent=11 // pred_region
        _
      $region132: #{_lambda_.1} parent=11 // pred_fallthru
        _
      // Predicated region
      $region133: #{_lambda_.1} parent=11 // pred_check
        %p879 = pneg %p748
      $region134: #{_lambda_.1} parent=11 // pred_check_branch
        %881 = sbr.rel (%p879) target = $region136
      $region135: #{_lambda_.1} parent=11 // pred_region
        _
      $region136: #{_lambda_.1} parent=11 // pred_fallthru
        _
    $region12: #{_lambda_.1} parent=5 // pred_fallthru
      _
    %p882 = scmp.lt.s32.totalorder %s71, 2
    // Predicated region
    $region137: #{_lambda_.1} parent=5 // pred_check
      %p883 = pneg %p882
    $region138: #{_lambda_.1} parent=5 // pred_check_branch
      %885 = sbr.rel (%p883) target = $region140
    $region139: #{_lambda_.1} parent=5 // pred_region
      // Predicated region
      $region141: #{_lambda_.1} parent=139 // pred_check
        %p886 = pneg %p91
      $region142: #{_lambda_.1} parent=139 // pred_check_branch
        %888 = sbr.rel (%p886) target = $region144
      $region143: #{_lambda_.1} parent=139 // pred_region
        %s889 = smul.u32 8, %s71
        %p890 = scmp.lt.s32.totalorder %s889, 15
        %s891 = scalar_select %p890, %s889, 15
        %s892 = smul.addr %s891, 4
        %s893 = scalar_lea.vmem %s1, %s892
        %s894 = smul.u32 8, %s71
      $region144: #{_lambda_.1} parent=139 // pred_fallthru
        _
    $region140: #{_lambda_.1} parent=5 // pred_fallthru
      _
    %p895 = scmp.le.s32.totalorder 1, %s71
    %p896 = scmp.lt.s32.totalorder %s71, 3
    %p897 = pnand %p895, %p896
    %p898 = pneg %p897
    // Predicated region
    $region145: #{_lambda_.1} parent=5 // pred_check
      _
    $region146: #{_lambda_.1} parent=5 // pred_check_branch
      %900 = sbr.rel (%p897) target = $region148
    $region147: #{_lambda_.1} parent=5 // pred_region
      %s901 = ssub.s32 %s71, 1
      %s902 = smul.u32 8, %s76
      %p903 = scmp.lt.s32.totalorder %s902, 15
      %s904 = scalar_select %p903, %s902, 15
      %s905 = smul.addr %s904, 4
      %s906 = scalar_lea.vmem %s1, %s905
      %p907 = pneg %p97
      %p908 = pneg %p94
      %p909 = pneg %p118
      %p910 = pneg %p115
      %p911 = pneg %p139
      %p912 = pneg %p136
      %p913 = pneg %p160
      %p914 = pneg %p157
      %p915 = pneg %p181
      %p916 = pneg %p178
      %p917 = pneg %p202
      %p918 = pneg %p199
      %p919 = pneg %p223
      %p920 = pneg %p220
      %p921 = pneg %p244
      %p922 = pneg %p241
      %p923 = pneg %p265
      %p924 = pneg %p262
      %p925 = pneg %p286
      %p926 = pneg %p283
      %p927 = pneg %p307
      %p928 = pneg %p304
      %p929 = pneg %p328
      %p930 = pneg %p325
      %p931 = pneg %p349
      %p932 = pneg %p346
      %p933 = pneg %p370
      %p934 = pneg %p367
      %p935 = pneg %p391
      %p936 = pneg %p388
      %p937 = pneg %p412
      %p938 = pneg %p409
      %p939 = pneg %p433
      %p940 = pneg %p430
      %p941 = pneg %p454
      %p942 = pneg %p451
      %p943 = pneg %p475
      %p944 = pneg %p472
      %p945 = pneg %p496
      %p946 = pneg %p493
      %p947 = pneg %p517
      %p948 = pneg %p514
      %p949 = pneg %p538
      %p950 = pneg %p535
      %p951 = pneg %p559
      %p952 = pneg %p556
      %p953 = pneg %p580
      %p954 = pneg %p577
      %p955 = pneg %p601
      %p956 = pneg %p598
      %p957 = pneg %p622
      %p958 = pneg %p619
      %p959 = pneg %p643
      %p960 = pneg %p640
      %p961 = pneg %p664
      %p962 = pneg %p661
      %p963 = pneg %p685
      %p964 = pneg %p682
      %p965 = pneg %p706
      %p966 = pneg %p703
      %p967 = pneg %p727
      %p968 = pneg %p724
      %p969 = pneg %p748
      %p970 = pneg %p745
      %p971 = pneg %p774
      %p972 = pneg %p771
      %p973 = scmp.lt.s32.totalorder %s76, 1
      %s974 = scalar_select %p973, %s76, 1
      %s975 = smul.addr %s974, 8
      %s976 = scalar_lea.vmem %s65, %s975
      %s977 = smul.u32 8, %s76
      %p978 = scmp.lt.s32.totalorder %s977, 15
      %s979 = scalar_select %p978, %s977, 15
      %s980 = smul.addr %s979, 4
      %s981 = scalar_lea.vmem %s1, %s980
      %s982 = smul.u32 8, %s76
      %p983 = scmp.lt.s32.totalorder %s76, 1
      %s984 = scalar_select %p983, %s76, 1
      %s985 = smul.addr %s984, 8
      %s986 = scalar_lea.vmem %s65, %s985
      %v988 = vld [vmem:[%s981] sm:$0xf]
      %v989 = vld [vmem:[%s981 + $0x4] sm:$0xf]
      %v990 = vld [vmem:[%s981 + $0x8] sm:$0xf]
      %v991 = vld [vmem:[%s981 + $0xc] sm:$0xf]
      %v992 = vld [vmem:[%s981 + $0x10] sm:$0xf]
      %v993 = vld [vmem:[%s981 + $0x14] sm:$0xf]
      %v994 = vld [vmem:[%s981 + $0x18] sm:$0xf]
      %v995 = vld [vmem:[%s981 + $0x1c] sm:$0xf]
      %v996 = vld [vmem:[%s3] sm:$0xf]
      %v997 = vld [vmem:[%s3 + $0x4] sm:$0xf]
      %v998 = vld [vmem:[%s3 + $0x8] sm:$0xf]
      %v999 = vld [vmem:[%s3 + $0xc] sm:$0xf]
      %v1000 = vld [vmem:[%s5] sm:$0x1]
      %v1002 = vperm.slane %v1000, 0
      %v1012 = vunpack.c.l.b16 %v988
      %v1013 = vunpack.c.l.b16 %v989
      %v1014 = vunpack.c.l.b16 %v990
      %v1015 = vunpack.c.l.b16 %v991
      %v1016 = vunpack.c.l.b16 %v992
      %v1017 = vunpack.c.l.b16 %v993
      %v1018 = vunpack.c.l.b16 %v994
      %v1019 = vunpack.c.l.b16 %v995
      %v1020 = vpack.c.b16 %v1013, %v1012
      %v1021 = vpack.c.b16 %v1015, %v1014
      %v1022 = vpack.c.b16 %v1017, %v1016
      %v1023 = vpack.c.b16 %v1019, %v1018
      %v1028 = vunpack.c.l.b16 %v996
      %v1029 = vunpack.c.l.b16 %v997
      %v1030 = vunpack.c.l.b16 %v998
      %v1031 = vunpack.c.l.b16 %v999
      %v1032 = vpack.c.b16 %v1029, %v1028
      %v1033 = vpack.c.b16 %v1031, %v1030
      %vm1036 = vcmask 261120
      %v1038 = vsel %vm1036, %v1020, 0
      %v1041 = vsel %vm1036, %v1021, 0
      %v1044 = vsel %vm1036, %v1022, 0
      %v1047 = vsel %vm1036, %v1023, 0
      %1049 = vmatpush.bf16.msra.mxu0 0
      %1050 = vmatpush.bf16.msra.mxu0 0
      %1051 = vmatpush.bf16.msra.mxu0 0
      %1052 = vmatpush.bf16.msra.mxu0 0
      %1053 = vmatpush.bf16.msra.mxu0 0
      %1054 = vmatpush.bf16.msra.mxu0 0
      %1055 = vmatpush.bf16.msra.mxu0 %v1033
      %1056 = vmatpush.bf16.msra.mxu0 %v1032
      %1057 = vmatmul.bf16.gmra.mxu0 %v1038
      %v1058 = vpop.f32.mrf.mxu0
      %v1059 = vadd.f32 %v1002, %v1058
      %v1060 = vpop.f32.mrf.mxu0
      %v1061 = vadd.f32 %v1002, %v1060
      %1062 = vmatmul.bf16.gmra.mxu0 %v1041
      %v1063 = vpop.f32.mrf.mxu0
      %v1064 = vadd.f32 %v1002, %v1063
      %v1065 = vpop.f32.mrf.mxu0
      %v1066 = vadd.f32 %v1002, %v1065
      %1067 = vmatmul.bf16.gmra.mxu0 %v1044
      %v1068 = vpop.f32.mrf.mxu0
      %v1069 = vadd.f32 %v1002, %v1068
      %v1070 = vpop.f32.mrf.mxu0
      %v1071 = vadd.f32 %v1002, %v1070
      %1072 = vmatmul.bf16.gmra.mxu0 %v1047
      %v1073 = vpop.f32.mrf.mxu0
      %v1074 = vadd.f32 %v1002, %v1073
      %v1075 = vpop.f32.mrf.mxu0
      %v1076 = vadd.f32 %v1002, %v1075
      %1077 = vdwg.mxu0
      %v1078 = vmax.f32 %v1059, 0.0
      %v1079 = vmax.f32 %v1061, 0.0
      %v1080 = vmax.f32 %v1064, 0.0
      %v1081 = vmax.f32 %v1066, 0.0
      %v1082 = vmax.f32 %v1069, 0.0
      %v1083 = vmax.f32 %v1071, 0.0
      %v1084 = vmax.f32 %v1074, 0.0
      %v1085 = vmax.f32 %v1076, 0.0
      %v1086 = vmin.f32 %v1078, 6.0
      %v1087 = vmin.f32 %v1079, 6.0
      %v1088 = vmin.f32 %v1080, 6.0
      %v1089 = vmin.f32 %v1081, 6.0
      %v1090 = vmin.f32 %v1082, 6.0
      %v1091 = vmin.f32 %v1083, 6.0
      %v1092 = vmin.f32 %v1084, 6.0
      %v1093 = vmin.f32 %v1085, 6.0
      %v1094 = vpack.c.bf16 %v1087, %v1086
      %v1095 = vpack.c.bf16 %v1089, %v1088
      %v1096 = vpack.c.bf16 %v1091, %v1090
      %v1097 = vpack.c.bf16 %v1093, %v1092
      %v1098 = vld [vmem:[%s7] sm:$0xf]
      %v1099 = vld [vmem:[%s7 + $0x4] sm:$0xf]
      %v1100 = vld [vmem:[%s9] sm:$0x1]
      %v1102 = vperm.slane %v1100, 0
      %v1106 = vunpack.c.l.b16 %v1098
      %v1107 = vunpack.c.l.b16 %v1099
      %v1108 = vpack.c.b16 %v1107, %v1106
      %vm1110 = vcmask 130048
      %v1112 = vsel %vm1110, %v1094, 0
      %v1115 = vsel %vm1110, %v1095, 0
      %v1118 = vsel %vm1110, %v1096, 0
      %v1121 = vsel %vm1110, %v1097, 0
      %1123 = vmatpush.bf16.msra.mxu0 0
      %1124 = vmatpush.bf16.msra.mxu0 0
      %1125 = vmatpush.bf16.msra.mxu0 0
      %1126 = vmatpush.bf16.msra.mxu0 0
      %1127 = vmatpush.bf16.msra.mxu0 0
      %1128 = vmatpush.bf16.msra.mxu0 0
      %1129 = vmatpush.bf16.msra.mxu0 0
      %1130 = vmatpush.bf16.msra.mxu0 %v1108
      %1131 = vmatmul.bf16.gmra.mxu0 %v1112
      %v1132 = vpop.f32.mrf.mxu0
      %v1133 = vadd.f32 %v1102, %v1132
      %v1134 = vpop.f32.mrf.mxu0
      %v1135 = vadd.f32 %v1102, %v1134
      %1136 = vmatmul.bf16.gmra.mxu0 %v1115
      %v1137 = vpop.f32.mrf.mxu0
      %v1138 = vadd.f32 %v1102, %v1137
      %v1139 = vpop.f32.mrf.mxu0
      %v1140 = vadd.f32 %v1102, %v1139
      %1141 = vmatmul.bf16.gmra.mxu0 %v1118
      %v1142 = vpop.f32.mrf.mxu0
      %v1143 = vadd.f32 %v1102, %v1142
      %v1144 = vpop.f32.mrf.mxu0
      %v1145 = vadd.f32 %v1102, %v1144
      %1146 = vmatmul.bf16.gmra.mxu0 %v1121
      %v1147 = vpop.f32.mrf.mxu0
      %v1148 = vadd.f32 %v1102, %v1147
      %v1149 = vpop.f32.mrf.mxu0
      %v1150 = vadd.f32 %v1102, %v1149
      %1151 = vdwg.mxu0
      %v1152 = vmax.f32 %v1133, 0.0
      %v1153 = vmax.f32 %v1135, 0.0
      %v1154 = vmax.f32 %v1138, 0.0
      %v1155 = vmax.f32 %v1140, 0.0
      %v1156 = vmax.f32 %v1143, 0.0
      %v1157 = vmax.f32 %v1145, 0.0
      %v1158 = vmax.f32 %v1148, 0.0
      %v1159 = vmax.f32 %v1150, 0.0
      %v1160 = vmin.f32 %v1152, 6.0
      %v1161 = vmin.f32 %v1153, 6.0
      %v1162 = vmin.f32 %v1154, 6.0
      %v1163 = vmin.f32 %v1155, 6.0
      %v1164 = vmin.f32 %v1156, 6.0
      %v1165 = vmin.f32 %v1157, 6.0
      %v1166 = vmin.f32 %v1158, 6.0
      %v1167 = vmin.f32 %v1159, 6.0
      %vm1168 = vcmask 392192
      %1169 = vst.msk [vmem:[#allocation2] sm:$0xff] %vm1168, 0.0
      %1170 = vst.msk [vmem:[#allocation2 + $0x8] sm:$0xff] %vm1168, 0.0
      %1171 = vst.msk [vmem:[#allocation2 + $0x10] sm:$0xff] %vm1168, 0.0
      %s1172 = scalar_lea.vmem [#allocation2], 216
      %1173 = vst.msk [vmem:[%s1172] sm:$0xff] %vm1168, 0.0
      %1174 = vst.msk [vmem:[%s1172 + $0x8] sm:$0xff] %vm1168, 0.0
      %1175 = vst.msk [vmem:[%s1172 + $0x10] sm:$0xff] %vm1168, 0.0
      %s1176 = scalar_lea.vmem [#allocation2], 24
      %1177 = vst.msk [vmem:[%s1176] sm:$0xff] %vm1168, 0.0
      %1178 = vst.msk [vmem:[%s1176 + $0x18] sm:$0xff] %vm1168, 0.0
      %1179 = vst.msk [vmem:[%s1176 + $0x30] sm:$0xff] %vm1168, 0.0
      %1180 = vst.msk [vmem:[%s1176 + $0x48] sm:$0xff] %vm1168, 0.0
      %1181 = vst.msk [vmem:[%s1176 + $0x60] sm:$0xff] %vm1168, 0.0
      %1182 = vst.msk [vmem:[%s1176 + $0x78] sm:$0xff] %vm1168, 0.0
      %1183 = vst.msk [vmem:[%s1176 + $0x90] sm:$0xff] %vm1168, 0.0
      %1184 = vst.msk [vmem:[%s1176 + $0xa8] sm:$0xff] %vm1168, 0.0
      %1185 = vst.msk [vmem:[%s1176 + $0x10] sm:$0xff] %vm1168, 0.0
      %1186 = vst.msk [vmem:[%s1176 + $0x28] sm:$0xff] %vm1168, 0.0
      %1187 = vst.msk [vmem:[%s1176 + $0x40] sm:$0xff] %vm1168, 0.0
      %1188 = vst.msk [vmem:[%s1176 + $0x58] sm:$0xff] %vm1168, 0.0
      %1189 = vst.msk [vmem:[%s1176 + $0x70] sm:$0xff] %vm1168, 0.0
      %1190 = vst.msk [vmem:[%s1176 + $0x88] sm:$0xff] %vm1168, 0.0
      %1191 = vst.msk [vmem:[%s1176 + $0xa0] sm:$0xff] %vm1168, 0.0
      %1192 = vst.msk [vmem:[%s1176 + $0xb8] sm:$0xff] %vm1168, 0.0
      %1193 = vst.msk [vmem:[%s1176 + $0x8] sm:$0xff] %vm1168, %v1160
      %1194 = vst.msk [vmem:[%s1176 + $0x20] sm:$0xff] %vm1168, %v1161
      %1195 = vst.msk [vmem:[%s1176 + $0x38] sm:$0xff] %vm1168, %v1162
      %1196 = vst.msk [vmem:[%s1176 + $0x50] sm:$0xff] %vm1168, %v1163
      %1197 = vst.msk [vmem:[%s1176 + $0x68] sm:$0xff] %vm1168, %v1164
      %1198 = vst.msk [vmem:[%s1176 + $0x80] sm:$0xff] %vm1168, %v1165
      %1199 = vst.msk [vmem:[%s1176 + $0x98] sm:$0xff] %vm1168, %v1166
      %1200 = vst.msk [vmem:[%s1176 + $0xb0] sm:$0xff] %vm1168, %v1167
      %v1201 = vld [vmem:[#allocation2 + $0x7] sm:$0xff]
      %v1202 = vld [vmem:[#allocation2 + $0x1f] sm:$0xff]
      %v1203 = vld [vmem:[#allocation2 + $0x37] sm:$0xff]
      %v1204 = vld [vmem:[#allocation2 + $0x4f] sm:$0xff]
      %v1205 = vld [vmem:[#allocation2 + $0x67] sm:$0xff]
      %v1206 = vld [vmem:[#allocation2 + $0x7f] sm:$0xff]
      %v1207 = vld [vmem:[#allocation2 + $0x97] sm:$0xff]
      %v1208 = vld [vmem:[#allocation2 + $0xaf] sm:$0xff]
      %v1209 = vld [vmem:[#allocation2 + $0xc7] sm:$0xff]
      %v1210 = vld [vmem:[#allocation2 + $0xdf] sm:$0xff]
      %v1211 = vld [vmem:[#allocation2 + $0x8] sm:$0xff]
      %v1212 = vld [vmem:[#allocation2 + $0x20] sm:$0xff]
      %v1213 = vld [vmem:[#allocation2 + $0x38] sm:$0xff]
      %v1214 = vld [vmem:[#allocation2 + $0x50] sm:$0xff]
      %v1215 = vld [vmem:[#allocation2 + $0x68] sm:$0xff]
      %v1216 = vld [vmem:[#allocation2 + $0x80] sm:$0xff]
      %v1217 = vld [vmem:[#allocation2 + $0x98] sm:$0xff]
      %v1218 = vld [vmem:[#allocation2 + $0xb0] sm:$0xff]
      %v1219 = vld [vmem:[#allocation2 + $0xc8] sm:$0xff]
      %v1220 = vld [vmem:[#allocation2 + $0xe0] sm:$0xff]
      %v1221 = vld [vmem:[#allocation2 + $0x9] sm:$0xff]
      %v1222 = vld [vmem:[#allocation2 + $0x21] sm:$0xff]
      %v1223 = vld [vmem:[#allocation2 + $0x39] sm:$0xff]
      %v1224 = vld [vmem:[#allocation2 + $0x51] sm:$0xff]
      %v1225 = vld [vmem:[#allocation2 + $0x69] sm:$0xff]
      %v1226 = vld [vmem:[#allocation2 + $0x81] sm:$0xff]
      %v1227 = vld [vmem:[#allocation2 + $0x99] sm:$0xff]
      %v1228 = vld [vmem:[#allocation2 + $0xb1] sm:$0xff]
      %v1229 = vld [vmem:[#allocation2 + $0xc9] sm:$0xff]
      %v1230 = vld [vmem:[#allocation2 + $0xe1] sm:$0xff]
      %v1231 = vld [vmem:[%s11] sm:$0x1]
      %v1232 = vld [vmem:[%s11 + $0x1] sm:$0x1]
      %v1233 = vld [vmem:[%s11 + $0x2] sm:$0x1]
      %v1234 = vld [vmem:[%s11 + $0x3] sm:$0x1]
      %v1235 = vld [vmem:[%s11 + $0x4] sm:$0x1]
      %v1236 = vld [vmem:[%s11 + $0x5] sm:$0x1]
      %v1237 = vld [vmem:[%s11 + $0x6] sm:$0x1]
      %v1238 = vld [vmem:[%s11 + $0x7] sm:$0x1]
      %v1239 = vld [vmem:[%s11 + $0x8] sm:$0x1]
      %v1241 = vperm.slane %v1231, 0
      %v1243 = vmul.f32 %v1201, %v1241
      %v1244 = vmul.f32 %v1202, %v1241
      %v1245 = vmul.f32 %v1203, %v1241
      %v1246 = vmul.f32 %v1204, %v1241
      %v1247 = vmul.f32 %v1205, %v1241
      %v1248 = vmul.f32 %v1206, %v1241
      %v1249 = vmul.f32 %v1207, %v1241
      %v1250 = vmul.f32 %v1208, %v1241
      %v1252 = vperm.slane %v1232, 0
      %v1254 = vmul.f32 %v1211, %v1252
      %v1255 = vmul.f32 %v1212, %v1252
      %v1256 = vmul.f32 %v1213, %v1252
      %v1257 = vmul.f32 %v1214, %v1252
      %v1258 = vmul.f32 %v1215, %v1252
      %v1259 = vmul.f32 %v1216, %v1252
      %v1260 = vmul.f32 %v1217, %v1252
      %v1261 = vmul.f32 %v1218, %v1252
      %v1262 = vadd.f32 %v1243, %v1254
      %v1263 = vadd.f32 %v1244, %v1255
      %v1264 = vadd.f32 %v1245, %v1256
      %v1265 = vadd.f32 %v1246, %v1257
      %v1266 = vadd.f32 %v1247, %v1258
      %v1267 = vadd.f32 %v1248, %v1259
      %v1268 = vadd.f32 %v1249, %v1260
      %v1269 = vadd.f32 %v1250, %v1261
      %v1271 = vperm.slane %v1233, 0
      %v1273 = vmul.f32 %v1221, %v1271
      %v1274 = vmul.f32 %v1222, %v1271
      %v1275 = vmul.f32 %v1223, %v1271
      %v1276 = vmul.f32 %v1224, %v1271
      %v1277 = vmul.f32 %v1225, %v1271
      %v1278 = vmul.f32 %v1226, %v1271
      %v1279 = vmul.f32 %v1227, %v1271
      %v1280 = vmul.f32 %v1228, %v1271
      %v1281 = vadd.f32 %v1262, %v1273
      %v1282 = vadd.f32 %v1263, %v1274
      %v1283 = vadd.f32 %v1264, %v1275
      %v1284 = vadd.f32 %v1265, %v1276
      %v1285 = vadd.f32 %v1266, %v1277
      %v1286 = vadd.f32 %v1267, %v1278
      %v1287 = vadd.f32 %v1268, %v1279
      %v1288 = vadd.f32 %v1269, %v1280
      %v1290 = vperm.slane %v1234, 0
      %v1292 = vmul.f32 %v1202, %v1290
      %v1293 = vmul.f32 %v1203, %v1290
      %v1294 = vmul.f32 %v1204, %v1290
      %v1295 = vmul.f32 %v1205, %v1290
      %v1296 = vmul.f32 %v1206, %v1290
      %v1297 = vmul.f32 %v1207, %v1290
      %v1298 = vmul.f32 %v1208, %v1290
      %v1299 = vmul.f32 %v1209, %v1290
      %v1300 = vadd.f32 %v1281, %v1292
      %v1301 = vadd.f32 %v1282, %v1293
      %v1302 = vadd.f32 %v1283, %v1294
      %v1303 = vadd.f32 %v1284, %v1295
      %v1304 = vadd.f32 %v1285, %v1296
      %v1305 = vadd.f32 %v1286, %v1297
      %v1306 = vadd.f32 %v1287, %v1298
      %v1307 = vadd.f32 %v1288, %v1299
      %v1309 = vperm.slane %v1235, 0
      %v1311 = vmul.f32 %v1212, %v1309
      %v1312 = vmul.f32 %v1213, %v1309
      %v1313 = vmul.f32 %v1214, %v1309
      %v1314 = vmul.f32 %v1215, %v1309
      %v1315 = vmul.f32 %v1216, %v1309
      %v1316 = vmul.f32 %v1217, %v1309
      %v1317 = vmul.f32 %v1218, %v1309
      %v1318 = vmul.f32 %v1219, %v1309
      %v1319 = vadd.f32 %v1300, %v1311
      %v1320 = vadd.f32 %v1301, %v1312
      %v1321 = vadd.f32 %v1302, %v1313
      %v1322 = vadd.f32 %v1303, %v1314
      %v1323 = vadd.f32 %v1304, %v1315
      %v1324 = vadd.f32 %v1305, %v1316
      %v1325 = vadd.f32 %v1306, %v1317
      %v1326 = vadd.f32 %v1307, %v1318
      %v1328 = vperm.slane %v1236, 0
      %v1330 = vmul.f32 %v1222, %v1328
      %v1331 = vmul.f32 %v1223, %v1328
      %v1332 = vmul.f32 %v1224, %v1328
      %v1333 = vmul.f32 %v1225, %v1328
      %v1334 = vmul.f32 %v1226, %v1328
      %v1335 = vmul.f32 %v1227, %v1328
      %v1336 = vmul.f32 %v1228, %v1328
      %v1337 = vmul.f32 %v1229, %v1328
      %v1338 = vadd.f32 %v1319, %v1330
      %v1339 = vadd.f32 %v1320, %v1331
      %v1340 = vadd.f32 %v1321, %v1332
      %v1341 = vadd.f32 %v1322, %v1333
      %v1342 = vadd.f32 %v1323, %v1334
      %v1343 = vadd.f32 %v1324, %v1335
      %v1344 = vadd.f32 %v1325, %v1336
      %v1345 = vadd.f32 %v1326, %v1337
      %v1347 = vperm.slane %v1237, 0
      %v1349 = vmul.f32 %v1203, %v1347
      %v1350 = vmul.f32 %v1204, %v1347
      %v1351 = vmul.f32 %v1205, %v1347
      %v1352 = vmul.f32 %v1206, %v1347
      %v1353 = vmul.f32 %v1207, %v1347
      %v1354 = vmul.f32 %v1208, %v1347
      %v1355 = vmul.f32 %v1209, %v1347
      %v1356 = vmul.f32 %v1210, %v1347
      %v1357 = vadd.f32 %v1338, %v1349
      %v1358 = vadd.f32 %v1339, %v1350
      %v1359 = vadd.f32 %v1340, %v1351
      %v1360 = vadd.f32 %v1341, %v1352
      %v1361 = vadd.f32 %v1342, %v1353
      %v1362 = vadd.f32 %v1343, %v1354
      %v1363 = vadd.f32 %v1344, %v1355
      %v1364 = vadd.f32 %v1345, %v1356
      %v1366 = vperm.slane %v1238, 0
      %v1368 = vmul.f32 %v1213, %v1366
      %v1369 = vmul.f32 %v1214, %v1366
      %v1370 = vmul.f32 %v1215, %v1366
      %v1371 = vmul.f32 %v1216, %v1366
      %v1372 = vmul.f32 %v1217, %v1366
      %v1373 = vmul.f32 %v1218, %v1366
      %v1374 = vmul.f32 %v1219, %v1366
      %v1375 = vmul.f32 %v1220, %v1366
      %v1376 = vadd.f32 %v1357, %v1368
      %v1377 = vadd.f32 %v1358, %v1369
      %v1378 = vadd.f32 %v1359, %v1370
      %v1379 = vadd.f32 %v1360, %v1371
      %v1380 = vadd.f32 %v1361, %v1372
      %v1381 = vadd.f32 %v1362, %v1373
      %v1382 = vadd.f32 %v1363, %v1374
      %v1383 = vadd.f32 %v1364, %v1375
      %v1385 = vperm.slane %v1239, 0
      %v1387 = vmul.f32 %v1223, %v1385
      %v1388 = vmul.f32 %v1224, %v1385
      %v1389 = vmul.f32 %v1225, %v1385
      %v1390 = vmul.f32 %v1226, %v1385
      %v1391 = vmul.f32 %v1227, %v1385
      %v1392 = vmul.f32 %v1228, %v1385
      %v1393 = vmul.f32 %v1229, %v1385
      %v1394 = vmul.f32 %v1230, %v1385
      %v1395 = vadd.f32 %v1376, %v1387
      %v1396 = vadd.f32 %v1377, %v1388
      %v1397 = vadd.f32 %v1378, %v1389
      %v1398 = vadd.f32 %v1379, %v1390
      %v1399 = vadd.f32 %v1380, %v1391
      %v1400 = vadd.f32 %v1381, %v1392
      %v1401 = vadd.f32 %v1382, %v1393
      %v1402 = vadd.f32 %v1383, %v1394
      %v1403 = vld [vmem:[%s13] sm:$0x1]
      %v1405 = vperm.slane %v1403, 0
      %v1407 = vadd.f32 %v1395, %v1405
      %v1408 = vadd.f32 %v1396, %v1405
      %v1409 = vadd.f32 %v1397, %v1405
      %v1410 = vadd.f32 %v1398, %v1405
      %v1411 = vadd.f32 %v1399, %v1405
      %v1412 = vadd.f32 %v1400, %v1405
      %v1413 = vadd.f32 %v1401, %v1405
      %v1414 = vadd.f32 %v1402, %v1405
      %v1415 = vmax.f32 %v1407, 0.0
      %v1416 = vmax.f32 %v1408, 0.0
      %v1417 = vmax.f32 %v1409, 0.0
      %v1418 = vmax.f32 %v1410, 0.0
      %v1419 = vmax.f32 %v1411, 0.0
      %v1420 = vmax.f32 %v1412, 0.0
      %v1421 = vmax.f32 %v1413, 0.0
      %v1422 = vmax.f32 %v1414, 0.0
      %v1423 = vmin.f32 %v1415, 6.0
      %v1424 = vmin.f32 %v1416, 6.0
      %v1425 = vmin.f32 %v1417, 6.0
      %v1426 = vmin.f32 %v1418, 6.0
      %v1427 = vmin.f32 %v1419, 6.0
      %v1428 = vmin.f32 %v1420, 6.0
      %v1429 = vmin.f32 %v1421, 6.0
      %v1430 = vmin.f32 %v1422, 6.0
      %v1431 = vpack.c.bf16 %v1424, %v1423
      %v1432 = vpack.c.bf16 %v1426, %v1425
      %v1433 = vpack.c.bf16 %v1428, %v1427
      %v1434 = vpack.c.bf16 %v1430, %v1429
      %v1435 = vld [vmem:[%s15] sm:$0xf]
      %v1436 = vld [vmem:[%s15 + $0x4] sm:$0xf]
      %v1437 = vld [vmem:[%s15 + $0x8] sm:$0xf]
      %v1438 = vld [vmem:[%s15 + $0xc] sm:$0xf]
      %v1439 = vld [vmem:[%s15 + $0x10] sm:$0xf]
      %v1440 = vld [vmem:[%s15 + $0x14] sm:$0xf]
      %v1441 = vld [vmem:[%s17] sm:$0x1]
      %v1443 = vperm.slane %v1441, 0
      %v1451 = vunpack.c.l.b16 %v1435
      %v1452 = vunpack.c.l.b16 %v1436
      %v1453 = vunpack.c.l.b16 %v1437
      %v1454 = vunpack.c.l.b16 %v1438
      %v1455 = vunpack.c.l.b16 %v1439
      %v1456 = vunpack.c.l.b16 %v1440
      %v1457 = vpack.c.b16 %v1452, %v1451
      %v1458 = vpack.c.b16 %v1454, %v1453
      %v1459 = vpack.c.b16 %v1456, %v1455
      %v1464 = vsel %vm1168, %v1431, 0
      %v1467 = vsel %vm1168, %v1432, 0
      %v1470 = vsel %vm1168, %v1433, 0
      %v1473 = vsel %vm1168, %v1434, 0
      %1475 = vmatpush.bf16.msra.mxu0 0
      %1476 = vmatpush.bf16.msra.mxu0 0
      %1477 = vmatpush.bf16.msra.mxu0 0
      %1478 = vmatpush.bf16.msra.mxu0 0
      %1479 = vmatpush.bf16.msra.mxu0 0
      %1480 = vmatpush.bf16.msra.mxu0 %v1459
      %1481 = vmatpush.bf16.msra.mxu0 %v1458
      %1482 = vmatpush.bf16.msra.mxu0 %v1457
      %1483 = vmatmul.bf16.gmra.mxu0 %v1464
      %v1484 = vpop.f32.mrf.mxu0
      %v1485 = vadd.f32 %v1443, %v1484
      %v1486 = vpop.f32.mrf.mxu0
      %v1487 = vadd.f32 %v1443, %v1486
      %1488 = vmatmul.bf16.gmra.mxu0 %v1467
      %v1489 = vpop.f32.mrf.mxu0
      %v1490 = vadd.f32 %v1443, %v1489
      %v1491 = vpop.f32.mrf.mxu0
      %v1492 = vadd.f32 %v1443, %v1491
      %1493 = vmatmul.bf16.gmra.mxu0 %v1470
      %v1494 = vpop.f32.mrf.mxu0
      %v1495 = vadd.f32 %v1443, %v1494
      %v1496 = vpop.f32.mrf.mxu0
      %v1497 = vadd.f32 %v1443, %v1496
      %1498 = vmatmul.bf16.gmra.mxu0 %v1473
      %v1499 = vpop.f32.mrf.mxu0
      %v1500 = vadd.f32 %v1443, %v1499
      %v1501 = vpop.f32.mrf.mxu0
      %v1502 = vadd.f32 %v1443, %v1501
      %1503 = vdwg.mxu0
      %v1504 = vmax.f32 %v1485, 0.0
      %v1505 = vmax.f32 %v1487, 0.0
      %v1506 = vmax.f32 %v1490, 0.0
      %v1507 = vmax.f32 %v1492, 0.0
      %v1508 = vmax.f32 %v1495, 0.0
      %v1509 = vmax.f32 %v1497, 0.0
      %v1510 = vmax.f32 %v1500, 0.0
      %v1511 = vmax.f32 %v1502, 0.0
      %v1512 = vmin.f32 %v1504, 6.0
      %v1513 = vmin.f32 %v1505, 6.0
      %v1514 = vmin.f32 %v1506, 6.0
      %v1515 = vmin.f32 %v1507, 6.0
      %v1516 = vmin.f32 %v1508, 6.0
      %v1517 = vmin.f32 %v1509, 6.0
      %v1518 = vmin.f32 %v1510, 6.0
      %v1519 = vmin.f32 %v1511, 6.0
      %vm1520 = vcmask 523264
      %v1521 = vsel %vm1520, %v1512, 0.0
      %v1522 = vsel %vm1520, %v1513, 0.0
      %v1523 = vadd.f32 %v1521, %v1522
      %v1524 = vsel %vm1520, %v1514, 0.0
      %v1525 = vadd.f32 %v1523, %v1524
      %v1526 = vsel %vm1520, %v1515, 0.0
      %v1527 = vadd.f32 %v1525, %v1526
      %v1528 = vsel %vm1520, %v1516, 0.0
      %v1529 = vadd.f32 %v1527, %v1528
      %v1530 = vsel %vm1520, %v1517, 0.0
      %v1531 = vadd.f32 %v1529, %v1530
      %v1532 = vsel %vm1520, %v1518, 0.0
      %v1533 = vadd.f32 %v1531, %v1532
      %v1534 = vsel %vm1520, %v1519, 0.0
      %v1535 = vadd.f32 %v1533, %v1534
      %v1536 = vrot.slane %v1535, 4
      %v1537 = vadd.f32 %v1535, %v1536
      %v1538 = vrot.slane %v1537, 2
      %v1539 = vadd.f32 %v1537, %v1538
      %v1540 = vrot.slane %v1539, 1
      %v1541 = vadd.f32 %v1539, %v1540
      %v1542 = vrcp.pop 64.0
      %v1543 = vmul.f32 64.0, %v1542
      %v1544 = vsub.f32 1.0, %v1543
      %v1545 = vmul.f32 %v1542, %v1544
      %v1546 = vadd.f32 %v1542, %v1545
      %vm1547 = vweird.f32 %v1542
      %v1548 = vsel %vm1547, %v1542, %v1546
      %v1549 = vmul.f32 %v1541, %v1548
      %v1550 = vpack.c.bf16 %v1549, %v1549
      %v1551 = vld [vmem:[%s19] sm:$0xf]
      %v1552 = vld [vmem:[%s19 + $0x4] sm:$0xf]
      %v1553 = vld [vmem:[%s19 + $0x8] sm:$0xf]
      %v1554 = vld [vmem:[%s19 + $0xc] sm:$0xf]
      %v1555 = vld [vmem:[%s19 + $0x10] sm:$0xf]
      %v1556 = vld [vmem:[%s19 + $0x14] sm:$0xf]
      %v1557 = vld [vmem:[%s19 + $0x18] sm:$0xf]
      %v1558 = vld [vmem:[%s19 + $0x1c] sm:$0xf]
      %v1559 = vld [vmem:[%s21] sm:$0x1]
      %v1568 = vunpack.c.l.b16 %v1551
      %v1569 = vunpack.c.l.b16 %v1552
      %v1570 = vunpack.c.l.b16 %v1553
      %v1571 = vunpack.c.l.b16 %v1554
      %v1572 = vunpack.c.l.b16 %v1555
      %v1573 = vunpack.c.l.b16 %v1556
      %v1574 = vunpack.c.l.b16 %v1557
      %v1575 = vunpack.c.l.b16 %v1558
      %v1576 = vpack.c.b16 %v1569, %v1568
      %v1577 = vpack.c.b16 %v1571, %v1570
      %v1578 = vpack.c.b16 %v1573, %v1572
      %v1579 = vpack.c.b16 %v1575, %v1574
      %v1585 = vsel %vm1520, %v1550, 0
      %1587 = vmatpush.bf16.msra.mxu0 0
      %1588 = vmatpush.bf16.msra.mxu0 0
      %1589 = vmatpush.bf16.msra.mxu0 0
      %1590 = vmatpush.bf16.msra.mxu0 0
      %1591 = vmatpush.bf16.msra.mxu0 %v1579
      %1592 = vmatpush.bf16.msra.mxu0 %v1578
      %1593 = vmatpush.bf16.msra.mxu0 %v1577
      %1594 = vmatpush.bf16.msra.mxu0 %v1576
      %1595 = vmatmul.bf16.gmra.mxu0 %v1585
      %v1596 = vpop.f32.mrf.mxu0
      %v1597 = vadd.f32 %v1559, %v1596
      %v1598 = vpop.f32.mrf.mxu0
      %1599 = vdwg.mxu0
      %v1600 = vld [vmem:[%s23] sm:$0x3f]
      %v1601 = vperm.slane %v1597, 0
      %v1602 = vmul.f32 %v1601, %v1600
      %v1603 = vpack.c.bf16 %v1602, %v1602
      %v1604 = vld [vmem:[%s25] sm:$0xf]
      %v1605 = vld [vmem:[%s25 + $0x4] sm:$0xf]
      %v1606 = vld [vmem:[%s25 + $0x8] sm:$0x1]
      %v1607 = vld [vmem:[%s27] sm:$0x1]
      %v1609 = vperm.slane %v1607, 0
      %v1614 = vunpack.c.l.b16 %v1604
      %v1615 = vunpack.c.l.b16 %v1605
      %v1616 = vunpack.c.l.b16 %v1606
      %v1617 = vpack.c.b16 %v1615, %v1614
      %v1618 = vpack.c.b16 %v1616, %v1616
      %vm1620 = vcmask 146432
      %v1622 = vsel %vm1620, %v1603, 0
      %vm1624 = vcmask 1040384
      %v1626 = vsel %vm1624, %v1618, 0
      %1628 = vmatpush.bf16.msra.mxu0 0
      %1629 = vmatpush.bf16.msra.mxu0 0
      %1630 = vmatpush.bf16.msra.mxu0 0
      %1631 = vmatpush.bf16.msra.mxu0 0
      %1632 = vmatpush.bf16.msra.mxu0 0
      %1633 = vmatpush.bf16.msra.mxu0 0
      %1634 = vmatpush.bf16.msra.mxu0 %v1626
      %1635 = vmatpush.bf16.msra.mxu0 %v1617
      %1636 = vmatmul.bf16.gmra.mxu0 %v1622
      %v1637 = vpop.f32.mrf.mxu0
      %v1638 = vadd.f32 %v1609, %v1637
      %v1639 = vpop.f32.mrf.mxu0
      %1640 = vdwg.mxu0
      %v1641 = vmax.f32 %v1638, 0.0
      %v1642 = vpack.c.bf16 %v1641, %v1641
      %v1643 = vld [vmem:[%s29] sm:$0xf]
      %v1644 = vld [vmem:[%s29 + $0x4] sm:$0xf]
      %v1645 = vld [vmem:[%s29 + $0x8] sm:$0xf]
      %v1646 = vld [vmem:[%s29 + $0xc] sm:$0xf]
      %v1647 = vld [vmem:[%s31] sm:$0x1]
      %v1649 = vperm.slane %v1647, 0
      %v1655 = vunpack.c.l.b16 %v1643
      %v1656 = vunpack.c.l.b16 %v1644
      %v1657 = vunpack.c.l.b16 %v1645
      %v1658 = vunpack.c.l.b16 %v1646
      %v1659 = vpack.c.b16 %v1656, %v1655
      %v1660 = vpack.c.b16 %v1658, %v1657
      %v1664 = vsel %vm1036, %v1642, 0
      %1666 = vmatpush.bf16.msra.mxu0 0
      %1667 = vmatpush.bf16.msra.mxu0 0
      %1668 = vmatpush.bf16.msra.mxu0 0
      %1669 = vmatpush.bf16.msra.mxu0 0
      %1670 = vmatpush.bf16.msra.mxu0 0
      %1671 = vmatpush.bf16.msra.mxu0 0
      %1672 = vmatpush.bf16.msra.mxu0 %v1660
      %1673 = vmatpush.bf16.msra.mxu0 %v1659
      %1674 = vmatmul.bf16.gmra.mxu0 %v1664
      %v1675 = vpop.f32.mrf.mxu0
      %v1676 = vadd.f32 %v1649, %v1675
      %v1677 = vpop.f32.mrf.mxu0
      %1678 = vdwg.mxu0
      %v1679 = vmax.f32 %v1676, 0.0
      %v1680 = vpack.c.bf16 %v1679, %v1679
      %v1681 = vld [vmem:[%s33] sm:$0xf]
      %v1682 = vld [vmem:[%s33 + $0x4] sm:$0xf]
      %v1683 = vld [vmem:[%s33 + $0x8] sm:$0xf]
      %v1684 = vld [vmem:[%s33 + $0xc] sm:$0xf]
      %v1685 = vld [vmem:[%s35] sm:$0x1]
      %v1687 = vperm.slane %v1685, 0
      %v1693 = vunpack.c.l.b16 %v1681
      %v1694 = vunpack.c.l.b16 %v1682
      %v1695 = vunpack.c.l.b16 %v1683
      %v1696 = vunpack.c.l.b16 %v1684
      %v1697 = vpack.c.b16 %v1694, %v1693
      %v1698 = vpack.c.b16 %v1696, %v1695
      %v1702 = vsel %vm1036, %v1680, 0
      %1704 = vmatpush.bf16.msra.mxu0 0
      %1705 = vmatpush.bf16.msra.mxu0 0
      %1706 = vmatpush.bf16.msra.mxu0 0
      %1707 = vmatpush.bf16.msra.mxu0 0
      %1708 = vmatpush.bf16.msra.mxu0 0
      %1709 = vmatpush.bf16.msra.mxu0 0
      %1710 = vmatpush.bf16.msra.mxu0 %v1698
      %1711 = vmatpush.bf16.msra.mxu0 %v1697
      %1712 = vmatmul.bf16.gmra.mxu0 %v1702
      %v1713 = vpop.f32.mrf.mxu0
      %v1714 = vadd.f32 %v1687, %v1713
      %v1715 = vpop.f32.mrf.mxu0
      %1716 = vdwg.mxu0
      %v1717 = vmax.f32 %v1714, 0.0
      %v1718 = vpack.c.bf16 %v1717, %v1717
      %v1719 = vld [vmem:[%s37] sm:$0xf]
      %v1720 = vld [vmem:[%s37 + $0x4] sm:$0xf]
      %v1721 = vld [vmem:[%s37 + $0x8] sm:$0xf]
      %v1722 = vld [vmem:[%s37 + $0xc] sm:$0xf]
      %v1723 = vld [vmem:[%s39] sm:$0x1]
      %v1725 = vperm.slane %v1723, 0
      %v1731 = vunpack.c.l.b16 %v1719
      %v1732 = vunpack.c.l.b16 %v1720
      %v1733 = vunpack.c.l.b16 %v1721
      %v1734 = vunpack.c.l.b16 %v1722
      %v1735 = vpack.c.b16 %v1732, %v1731
      %v1736 = vpack.c.b16 %v1734, %v1733
      %v1740 = vsel %vm1036, %v1718, 0
      %1742 = vmatpush.bf16.msra.mxu0 0
      %1743 = vmatpush.bf16.msra.mxu0 0
      %1744 = vmatpush.bf16.msra.mxu0 0
      %1745 = vmatpush.bf16.msra.mxu0 0
      %1746 = vmatpush.bf16.msra.mxu0 0
      %1747 = vmatpush.bf16.msra.mxu0 0
      %1748 = vmatpush.bf16.msra.mxu0 %v1736
      %1749 = vmatpush.bf16.msra.mxu0 %v1735
      %1750 = vmatmul.bf16.gmra.mxu0 %v1740
      %v1751 = vpop.f32.mrf.mxu0
      %v1752 = vadd.f32 %v1725, %v1751
      %v1753 = vpop.f32.mrf.mxu0
      %1754 = vdwg.mxu0
      %v1755 = vmax.f32 %v1752, 0.0
      %v1756 = vpack.c.bf16 %v1755, %v1755
      %v1757 = vld [vmem:[%s41] sm:$0xf]
      %v1758 = vld [vmem:[%s41 + $0x4] sm:$0xf]
      %v1759 = vld [vmem:[%s41 + $0x8] sm:$0xf]
      %v1760 = vld [vmem:[%s41 + $0xc] sm:$0xf]
      %v1761 = vld [vmem:[%s41 + $0x10] sm:$0xf]
      %v1762 = vld [vmem:[%s41 + $0x14] sm:$0xf]
      %v1763 = vld [vmem:[%s41 + $0x18] sm:$0xf]
      %v1764 = vld [vmem:[%s41 + $0x1c] sm:$0xf]
      %v1765 = vld [vmem:[%s43] sm:$0x1]
      %v1767 = vperm.slane %v1765, 0
      %v1777 = vunpack.c.l.b16 %v1757
      %v1778 = vunpack.c.l.b16 %v1758
      %v1779 = vunpack.c.l.b16 %v1759
      %v1780 = vunpack.c.l.b16 %v1760
      %v1781 = vunpack.c.l.b16 %v1761
      %v1782 = vunpack.c.l.b16 %v1762
      %v1783 = vunpack.c.l.b16 %v1763
      %v1784 = vunpack.c.l.b16 %v1764
      %v1785 = vpack.c.b16 %v1778, %v1777
      %v1786 = vpack.c.b16 %v1780, %v1779
      %v1787 = vpack.c.b16 %v1782, %v1781
      %v1788 = vpack.c.b16 %v1784, %v1783
      %v1794 = vsel %vm1520, %v1756, 0
      %1796 = vmatpush.bf16.msra.mxu0 0
      %1797 = vmatpush.bf16.msra.mxu0 0
      %1798 = vmatpush.bf16.msra.mxu0 0
      %1799 = vmatpush.bf16.msra.mxu0 0
      %1800 = vmatpush.bf16.msra.mxu0 %v1788
      %1801 = vmatpush.bf16.msra.mxu0 %v1787
      %1802 = vmatpush.bf16.msra.mxu0 %v1786
      %1803 = vmatpush.bf16.msra.mxu0 %v1785
      %1804 = vmatmul.bf16.gmra.mxu0 %v1794
      %v1805 = vpop.f32.mrf.mxu0
      %v1806 = vadd.f32 %v1767, %v1805
      %v1807 = vpop.f32.mrf.mxu0
      %1808 = vdwg.mxu0
      %v1809 = vmax.f32 %v1806, 0.0
      %vm1810 = vcmask 1045504
      %v1811 = vsel %vm1810, %v1809, -inf
      %v1812 = vrot.slane %v1811, 4
      %v1813 = vmax.f32 %v1811, %v1812
      %v1814 = vrot.slane %v1813, 2
      %v1815 = vmax.f32 %v1813, %v1814
      %v1816 = vrot.slane %v1815, 1
      %v1817 = vmax.f32 %v1815, %v1816
      %v1818 = vld [vmem:[%s45] sm:$0xf]
      %v1819 = vld [vmem:[%s45 + $0x4] sm:$0xf]
      %v1820 = vld [vmem:[%s45 + $0x8] sm:$0xf]
      %v1821 = vld [vmem:[%s45 + $0xc] sm:$0xf]
      %v1826 = vunpack.c.l.b16 %v1818
      %v1827 = vunpack.c.l.b16 %v1819
      %v1828 = vunpack.c.l.b16 %v1820
      %v1829 = vunpack.c.l.b16 %v1821
      %v1830 = vpack.c.b16 %v1827, %v1826
      %v1831 = vpack.c.b16 %v1829, %v1828
      %1834 = vmatpush.bf16.msra.mxu0 0
      %1835 = vmatpush.bf16.msra.mxu0 0
      %1836 = vmatpush.bf16.msra.mxu0 0
      %1837 = vmatpush.bf16.msra.mxu0 0
      %1838 = vmatpush.bf16.msra.mxu0 0
      %1839 = vmatpush.bf16.msra.mxu0 0
      %1840 = vmatpush.bf16.msra.mxu0 %v1831
      %1841 = vmatpush.bf16.msra.mxu0 %v1830
      %1842 = vmatmul.bf16.gmra.mxu0 %v1702
      %v1843 = vpop.f32.mrf.mxu0
      %v1844 = vadd.f32 0.0, %v1843
      %v1845 = vpop.f32.mrf.mxu0
      %1846 = vdwg.mxu0
      %v1847 = vpack.c.bf16 %v1817, %v1817
      %v1848 = vld [vmem:[%s47] sm:$0xf]
      %v1849 = vld [vmem:[%s47 + $0x4] sm:$0xf]
      %v1850 = vld [vmem:[%s47 + $0x8] sm:$0xf]
      %v1851 = vld [vmem:[%s47 + $0xc] sm:$0xf]
      %v1852 = vld [vmem:[%s47 + $0x10] sm:$0xf]
      %v1853 = vld [vmem:[%s47 + $0x14] sm:$0xf]
      %v1854 = vld [vmem:[%s47 + $0x18] sm:$0xf]
      %v1855 = vld [vmem:[%s47 + $0x1c] sm:$0xf]
      %v1856 = vld [vmem:[%s47 + $0x20] sm:$0xf]
      %v1857 = vld [vmem:[%s47 + $0x24] sm:$0xf]
      %v1858 = vld [vmem:[%s47 + $0x28] sm:$0xf]
      %v1859 = vld [vmem:[%s47 + $0x2c] sm:$0xf]
      %v1860 = vld [vmem:[%s47 + $0x30] sm:$0xf]
      %v1861 = vld [vmem:[%s47 + $0x34] sm:$0xf]
      %v1862 = vld [vmem:[%s47 + $0x38] sm:$0xf]
      %v1863 = vld [vmem:[%s47 + $0x3c] sm:$0xf]
      %v1880 = vunpack.c.l.b16 %v1848
      %v1881 = vunpack.c.l.b16 %v1849
      %v1882 = vunpack.c.l.b16 %v1850
      %v1883 = vunpack.c.l.b16 %v1851
      %v1884 = vunpack.c.l.b16 %v1852
      %v1885 = vunpack.c.l.b16 %v1853
      %v1886 = vunpack.c.l.b16 %v1854
      %v1887 = vunpack.c.l.b16 %v1855
      %v1888 = vunpack.c.l.b16 %v1856
      %v1889 = vunpack.c.l.b16 %v1857
      %v1890 = vunpack.c.l.b16 %v1858
      %v1891 = vunpack.c.l.b16 %v1859
      %v1892 = vunpack.c.l.b16 %v1860
      %v1893 = vunpack.c.l.b16 %v1861
      %v1894 = vunpack.c.l.b16 %v1862
      %v1895 = vunpack.c.l.b16 %v1863
      %v1896 = vpack.c.b16 %v1881, %v1880
      %v1897 = vpack.c.b16 %v1883, %v1882
      %v1898 = vpack.c.b16 %v1885, %v1884
      %v1899 = vpack.c.b16 %v1887, %v1886
      %v1900 = vpack.c.b16 %v1889, %v1888
      %v1901 = vpack.c.b16 %v1891, %v1890
      %v1902 = vpack.c.b16 %v1893, %v1892
      %v1903 = vpack.c.b16 %v1895, %v1894
      %1912 = vmatpush.bf16.msra.mxu0 %v1903
      %1913 = vmatpush.bf16.msra.mxu0 %v1902
      %1914 = vmatpush.bf16.msra.mxu0 %v1901
      %1915 = vmatpush.bf16.msra.mxu0 %v1900
      %1916 = vmatpush.bf16.msra.mxu0 %v1899
      %1917 = vmatpush.bf16.msra.mxu0 %v1898
      %1918 = vmatpush.bf16.msra.mxu0 %v1897
      %1919 = vmatpush.bf16.msra.mxu0 %v1896
      %1920 = vmatmul.bf16.gmra.mxu0 %v1847
      %v1921 = vpop.f32.mrf.mxu0
      %v1922 = vadd.f32 0.0, %v1921
      %v1923 = vpop.f32.mrf.mxu0
      %1924 = vdwg.mxu0
      %v1925 = vperm.slane %v1922, 0
      %v1926 = vadd.f32 %v1844, %v1925
      %v1927 = vld [vmem:[%s49] sm:$0xf]
      %v1928 = vld [vmem:[%s49 + $0x4] sm:$0xf]
      %v1929 = vld [vmem:[%s49 + $0x8] sm:$0xf]
      %v1930 = vld [vmem:[%s49 + $0xc] sm:$0xf]
      %v1931 = vld [vmem:[%s49 + $0x10] sm:$0xf]
      %v1932 = vld [vmem:[%s49 + $0x14] sm:$0xf]
      %v1933 = vld [vmem:[%s49 + $0x18] sm:$0xf]
      %v1934 = vld [vmem:[%s49 + $0x1c] sm:$0xf]
      %v1943 = vunpack.c.l.b16 %v1927
      %v1944 = vunpack.c.l.b16 %v1928
      %v1945 = vunpack.c.l.b16 %v1929
      %v1946 = vunpack.c.l.b16 %v1930
      %v1947 = vunpack.c.l.b16 %v1931
      %v1948 = vunpack.c.l.b16 %v1932
      %v1949 = vunpack.c.l.b16 %v1933
      %v1950 = vunpack.c.l.b16 %v1934
      %v1951 = vpack.c.b16 %v1944, %v1943
      %v1952 = vpack.c.b16 %v1946, %v1945
      %v1953 = vpack.c.b16 %v1948, %v1947
      %v1954 = vpack.c.b16 %v1950, %v1949
      %1959 = vmatpush.bf16.msra.mxu0 0
      %1960 = vmatpush.bf16.msra.mxu0 0
      %1961 = vmatpush.bf16.msra.mxu0 0
      %1962 = vmatpush.bf16.msra.mxu0 0
      %1963 = vmatpush.bf16.msra.mxu0 %v1954
      %1964 = vmatpush.bf16.msra.mxu0 %v1953
      %1965 = vmatpush.bf16.msra.mxu0 %v1952
      %1966 = vmatpush.bf16.msra.mxu0 %v1951
      %1967 = vmatmul.bf16.gmra.mxu0 %v1585
      %v1968 = vpop.f32.mrf.mxu0
      %v1969 = vadd.f32 0.0, %v1968
      %v1970 = vpop.f32.mrf.mxu0
      %1971 = vdwg.mxu0
      %v1972 = vperm.slane %v1969, 0
      %v1973 = vadd.f32 %v1926, %v1972
      %v1974 = vld [vmem:[%s51] sm:$0x1]
      %v1976 = vperm.slane %v1974, 0
      %v1978 = vadd.f32 %v1973, %v1976
      %v1979 = vmax.f32 %v1978, 0.0
      %v1980 = vpack.c.bf16 %v1979, %v1979
      %v1981 = vld [vmem:[%s53] sm:$0xf]
      %v1982 = vld [vmem:[%s53 + $0x4] sm:$0xf]
      %v1983 = vld [vmem:[%s53 + $0x8] sm:$0xf]
      %v1984 = vld [vmem:[%s53 + $0xc] sm:$0xf]
      %v1985 = vld [vmem:[%s53 + $0x10] sm:$0xf]
      %v1986 = vld [vmem:[%s53 + $0x14] sm:$0xf]
      %v1987 = vld [vmem:[%s53 + $0x18] sm:$0xf]
      %v1988 = vld [vmem:[%s53 + $0x1c] sm:$0xf]
      %v1989 = vld [vmem:[%s55] sm:$0x1]
      %v1991 = vperm.slane %v1989, 0
      %v2001 = vunpack.c.l.b16 %v1981
      %v2002 = vunpack.c.l.b16 %v1982
      %v2003 = vunpack.c.l.b16 %v1983
      %v2004 = vunpack.c.l.b16 %v1984
      %v2005 = vunpack.c.l.b16 %v1985
      %v2006 = vunpack.c.l.b16 %v1986
      %v2007 = vunpack.c.l.b16 %v1987
      %v2008 = vunpack.c.l.b16 %v1988
      %v2009 = vpack.c.b16 %v2002, %v2001
      %v2010 = vpack.c.b16 %v2004, %v2003
      %v2011 = vpack.c.b16 %v2006, %v2005
      %v2012 = vpack.c.b16 %v2008, %v2007
      %v2018 = vsel %vm1520, %v1980, 0
      %2020 = vmatpush.bf16.msra.mxu0 0
      %2021 = vmatpush.bf16.msra.mxu0 0
      %2022 = vmatpush.bf16.msra.mxu0 0
      %2023 = vmatpush.bf16.msra.mxu0 0
      %2024 = vmatpush.bf16.msra.mxu0 %v2012
      %2025 = vmatpush.bf16.msra.mxu0 %v2011
      %2026 = vmatpush.bf16.msra.mxu0 %v2010
      %2027 = vmatpush.bf16.msra.mxu0 %v2009
      %2028 = vmatmul.bf16.gmra.mxu0 %v2018
      %v2029 = vpop.f32.mrf.mxu0
      %v2030 = vadd.f32 %v1991, %v2029
      %v2031 = vpop.f32.mrf.mxu0
      %2032 = vdwg.mxu0
      %v2033 = vmax.f32 %v2030, 0.0
      %v2034 = vpack.c.bf16 %v2033, %v2033
      %v2035 = vld [vmem:[%s57] sm:$0xf]
      %v2036 = vld [vmem:[%s57 + $0x4] sm:$0xf]
      %v2037 = vld [vmem:[%s57 + $0x8] sm:$0xf]
      %v2038 = vld [vmem:[%s57 + $0xc] sm:$0xf]
      %v2039 = vld [vmem:[%s59] sm:$0x1]
      %v2041 = vperm.slane %v2039, 0
      %v2047 = vunpack.c.l.b16 %v2035
      %v2048 = vunpack.c.l.b16 %v2036
      %v2049 = vunpack.c.l.b16 %v2037
      %v2050 = vunpack.c.l.b16 %v2038
      %v2051 = vpack.c.b16 %v2048, %v2047
      %v2052 = vpack.c.b16 %v2050, %v2049
      %v2056 = vsel %vm1036, %v2034, 0
      %2058 = vmatpush.bf16.msra.mxu0 0
      %2059 = vmatpush.bf16.msra.mxu0 0
      %2060 = vmatpush.bf16.msra.mxu0 0
      %2061 = vmatpush.bf16.msra.mxu0 0
      %2062 = vmatpush.bf16.msra.mxu0 0
      %2063 = vmatpush.bf16.msra.mxu0 0
      %2064 = vmatpush.bf16.msra.mxu0 %v2052
      %2065 = vmatpush.bf16.msra.mxu0 %v2051
      %2066 = vmatmul.bf16.gmra.mxu0 %v2056
      %v2067 = vpop.f32.mrf.mxu0
      %v2068 = vadd.f32 %v2041, %v2067
      %v2069 = vpop.f32.mrf.mxu0
      %2070 = vdwg.mxu0
      %v2071 = vmax.f32 %v2068, 0.0
      %v2072 = vpack.c.bf16 %v2071, %v2071
      %v2073 = vld [vmem:[%s61] sm:$0xf]
      %v2074 = vld [vmem:[%s61 + $0x4] sm:$0xf]
      %v2075 = vld [vmem:[%s63] sm:$0x1]
      %v2077 = vperm.slane %v2075, 0
      %v2081 = vunpack.c.l.b16 %v2073
      %v2082 = vunpack.c.l.b16 %v2074
      %v2083 = vpack.c.b16 %v2082, %v2081
      %v2086 = vsel %vm1110, %v2072, 0
      %2088 = vmatpush.bf16.msra.mxu0 0
      %2089 = vmatpush.bf16.msra.mxu0 0
      %2090 = vmatpush.bf16.msra.mxu0 0
      %2091 = vmatpush.bf16.msra.mxu0 0
      %2092 = vmatpush.bf16.msra.mxu0 0
      %2093 = vmatpush.bf16.msra.mxu0 0
      %2094 = vmatpush.bf16.msra.mxu0 0
      %2095 = vmatpush.bf16.msra.mxu0 %v2083
      %2096 = vmatmul.bf16.gmra.mxu0 %v2086
      %v2097 = vpop.f32.mrf.mxu0
      %v2098 = vadd.f32 %v2077, %v2097
      %v2099 = vpop.f32.mrf.mxu0
      %2100 = vdwg.mxu0
      %vm2101 = vcmask 21504
      %2102 = vst.msk [vmem:[%s986] sm:$0x3f] %vm2101, %v2098
      %p2103 = scmp.lt.s32.totalorder %s76, 1
      %s2104 = scalar_select %p2103, %s76, 1
      %s2105 = smul.addr %s2104, 8
      %s2106 = scalar_lea.vmem %s65, %s2105
      // Predicated region
      $region149: #{_lambda_.1} parent=147 // pred_check
        %p2107 = pneg %p771
      $region150: #{_lambda_.1} parent=147 // pred_check_branch
        %2109 = sbr.rel (%p2107) target = $region152
      $region151: #{_lambda_.1} parent=147 // pred_region
        _
      $region152: #{_lambda_.1} parent=147 // pred_fallthru
        _
    $region148: #{_lambda_.1} parent=5 // pred_fallthru
      _
    %p2110 = scmp.le.s32.totalorder 2, %s71
    // Predicated region
    $region153: #{_lambda_.1} parent=5 // pred_check
      %p2111 = pneg %p2110
    $region154: #{_lambda_.1} parent=5 // pred_check_branch
      %2113 = sbr.rel (%p2111) target = $region156
    $region155: #{_lambda_.1} parent=5 // pred_region
      %s2114 = ssub.s32 %s71, 2
      // Predicated region
      $region157: #{_lambda_.1} parent=155 // pred_check
        %p2115 = pneg %p777
      $region158: #{_lambda_.1} parent=155 // pred_check_branch
        %2117 = sbr.rel (%p2115) target = $region160
      $region159: #{_lambda_.1} parent=155 // pred_region
        %p2118 = scmp.lt.s32.totalorder %s77, 1
        %s2119 = scalar_select %p2118, %s77, 1
        %s2120 = smul.addr %s2119, 8
        %s2121 = scalar_lea.vmem %s65, %s2120
      $region160: #{_lambda_.1} parent=155 // pred_fallthru
        _
    $region156: #{_lambda_.1} parent=5 // pred_fallthru
      _
  $region6: #{_lambda_.1} parent=0 // loop_footer
    %s75 = sadd.s32 1, %s71
  $region7: #{_lambda_.1} parent=0 // loop_footer_branch
    %70 = sbr.rel target = $region3
  $region8: #{_lambda_.1} parent=0 // loop_exit
    _

</llo_original>
